<compile_context>
chip_gen: v7x
topology: tpu7x:2x2x1
jax: 0.10.0
libtpu: 0.0.40
codegen_flags: <defaults>
</compile_context>

<pallas_src>
import functools

import jax
import jax.numpy as jnp
from jax.experimental import pallas as pl
from jax.experimental.pallas import tpu as pltpu

block_size = 8
n_embd = 32


def _mha_kernel(x_ref, w_ref, o_ref, *, B, T, H, hs):
    # x_ref: (B, T, C)        input activations
    # w_ref: (3, H, C, hs)    packed [Q, K, V] per-head projection weights
    # o_ref: (B*T, H*hs)      concatenated head outputs (head h at cols h*hs:(h+1)*hs)
    N = B * T
    x = x_ref[...]
    C = x.shape[-1]
    x = x.reshape(N, C)                                   # free: merge (B, T)

    # Broadcast once so the projections are batched over heads (batch dim = H);
    # per-head q/k/v come out as separate batch slabs instead of lane slices.
    xb = jnp.broadcast_to(x[None, :, :], (H, N, C))       # (H, N, C)

    def project(w_h):                                     # (H, C, hs) -> (H*B, T, hs)
        y = jnp.einsum('hnc,hcd->hnd', xb, w_h,
                       preferred_element_type=jnp.float32)
        return y.reshape(H * B, T, hs)                    # free: split N -> (B, T)

    q = project(w_ref[0])
    k = project(w_ref[1])
    v = project(w_ref[2])

    # ---- one batched attention over all (head, batch) pairs -------------------
    scale = C ** (-0.5)     # faithful to bigram.py: scales by C (= n_embd), not hs
    s = jnp.einsum('nqd,nkd->nqk', q, k,
                   preferred_element_type=jnp.float32) * scale      # (H*B, T, T)

    row = jax.lax.broadcasted_iota(jnp.int32, (T, T), 0)
    col = jax.lax.broadcasted_iota(jnp.int32, (T, T), 1)
    causal = (col <= row)[None, :, :]                               # (1, T, T)
    # Safe with -inf: the diagonal is always unmasked, so every row max is finite.
    s = jnp.where(causal, s, -jnp.inf)

    s = s - jnp.max(s, axis=-1, keepdims=True)
    p = jnp.exp(s)
    denom = jnp.sum(p, axis=-1, keepdims=True)
    p = p * pl.reciprocal(denom)            # exact reciprocal: rows sum to 1

    o = jnp.einsum('nqk,nkd->nqd', p, v,
                   preferred_element_type=jnp.float32)              # (H*B, T, hs)

    # ---- head concatenation ----------------------------------------------------
    # Place head h's hs columns at offset h*hs of the output slab with a batched
    # matmul against constant one-hot matrices E[h, d, f] = (f == h*hs + d), then a
    # major-axis sum.  Keeps the relayout on the (idle) MXU instead of emitting
    # lane-offset concatenates / masked selects, and allows one full-slab store.
    F = H * hs
    o_hb = o.reshape(H, N, hs)                                      # free merge
    head = jax.lax.broadcasted_iota(jnp.int32, (H, hs, F), 0)
    d_in = jax.lax.broadcasted_iota(jnp.int32, (H, hs, F), 1)
    f_out = jax.lax.broadcasted_iota(jnp.int32, (H, hs, F), 2)
    E = (f_out == d_in + head * hs).astype(jnp.float32)             # (H, hs, F)
    slab = jnp.sum(
        jnp.einsum('hnd,hdf->hnf', o_hb, E, preferred_element_type=jnp.float32),
        axis=0)                                                     # (B*T, H*hs)

    o_ref[...] = slab.astype(o_ref.dtype)                           # single store


def pack_mha_weights(wq, wk, wv):
    """Pack per-head Q/K/V projection weights ONCE at parameter-init time.

    wq/wk/wv: (H, C, hs) each -> (3, H, C, hs).  Hoisted out of the forward
    path so no per-call packing ops run next to the (tiny) kernel.
    """
    return jnp.stack([wq, wk, wv], axis=0)


@jax.jit
def multi_head_attention(x, w_packed):
    """x: (B, T, C); w_packed: (3, H, C, hs).  Returns (B, T, H*hs)."""
    B, T, C = x.shape
    _, H, _, hs = w_packed.shape

    kernel = functools.partial(_mha_kernel, B=B, T=T, H=H, hs=hs)
    out_flat = pl.pallas_call(
        kernel,
        out_shape=jax.ShapeDtypeStruct((B * T, H * hs), x.dtype),
        # Whole problem (~20 KB) lives in VMEM for one gridless invocation:
        # per-step pipeline overhead (~0.35 us) would dominate at this size.
        # TODO(synk): if B or T grows, add a batch/q-tile grid axis with
        # dimension_semantics=("parallel", ...) so v7x's second TensorCore is
        # used, and re-derive tile sizes against v7x's 64 MiB VMEM.
        in_specs=[pl.BlockSpec(memory_space=pltpu.MemorySpace.VMEM),
                  pl.BlockSpec(memory_space=pltpu.MemorySpace.VMEM)],
        out_specs=pl.BlockSpec(memory_space=pltpu.MemorySpace.VMEM),
    )(x, w_packed)

    # Output is already in concatenated-head layout; this reshape is free.
    return out_flat.reshape(B, T, H * hs)


def _reference(x, wq, wk, wv):
    """Pure-JAX reference of the PyTorch forward (full-precision f32 matmuls)."""
    B, T, C = x.shape
    hp = jax.lax.Precision.HIGHEST
    mask = jnp.tril(jnp.ones((T, T), dtype=bool))
    outs = []
    for h in range(wq.shape[0]):
        q = jnp.einsum('btc,cd->btd', x, wq[h], precision=hp)
        k = jnp.einsum('btc,cd->btd', x, wk[h], precision=hp)
        v = jnp.einsum('btc,cd->btd', x, wv[h], precision=hp)
        wei = jnp.einsum('bqd,bkd->bqk', q, k, precision=hp) * C ** (-0.5)
        wei = jnp.where(mask, wei, -jnp.inf)
        wei = jax.nn.softmax(wei, axis=-1)
        outs.append(jnp.einsum('bqk,bkd->bqd', wei, v, precision=hp))
    return jnp.concatenate(outs, axis=-1)


if __name__ == "__main__":
    num_heads = 4
    head_size = n_embd // num_heads   # 8
    B, T, C = 2, block_size, n_embd   # (2, 8, 32)

    key = jax.random.PRNGKey(0)
    kx, kq, kk, kv = jax.random.split(key, 4)
    x = jax.random.normal(kx, (B, T, C), dtype=jnp.float32)
    # deterministic synthetic weights, stacked per head: (H, C, head_size)
    bound = 1.0 / (C ** 0.5)
    wq = jax.random.uniform(kq, (num_heads, C, head_size), jnp.float32, -bound, bound)
    wk = jax.random.uniform(kk, (num_heads, C, head_size), jnp.float32, -bound, bound)
    wv = jax.random.uniform(kv, (num_heads, C, head_size), jnp.float32, -bound, bound)

    # Weight packing happens once at init time, not in the forward path.
    w_packed = pack_mha_weights(wq, wk, wv)

    out = jax.block_until_ready(multi_head_attention(x, w_packed))
    ref = _reference(x, wq, wk, wv)

    assert out.shape == (B, T, num_heads * head_size)
    # Exact softmax reciprocal now; slack only covers f32-on-MXU pass differences.
    assert jnp.allclose(out, ref, atol=2e-3, rtol=2e-3), float(jnp.max(jnp.abs(out - ref)))
    print("KERNEL_OK")
</pallas_src>

<mosaic_0001>
module attributes {stable_mosaic.version = 11 : i64} {
  func.func @_mha_kernel(%arg0: memref<2x8x32xf32, #tpu.memory_space<vmem>>, %arg1: memref<3x4x32x8xf32, #tpu.memory_space<vmem>>, %arg2: memref<16x32xf32, #tpu.memory_space<vmem>>) attributes {dimension_semantics = [], scalar_prefetch = 0 : i64, scratch_operands = 0 : i64, tpu.core_type = #tpu.core_type<tc>} {
    %c0 = arith.constant 0 : index
    %c0_0 = arith.constant 0 : index
    %c0_1 = arith.constant 0 : index
    %0 = vector.load %arg0[%c0, %c0_0, %c0_1] : memref<2x8x32xf32, #tpu.memory_space<vmem>>, vector<2x8x32xf32>
    %1 = vector.shape_cast %0 : vector<2x8x32xf32> to vector<16x32xf32>
    %2 = vector.shape_cast %1 : vector<16x32xf32> to vector<1x16x32xf32>
    %3 = vector.shape_cast %2 : vector<1x16x32xf32> to vector<1x16x32xf32>
    %4 = vector.broadcast %3 : vector<1x16x32xf32> to vector<4x16x32xf32>
    %c0_2 = arith.constant 0 : index
    %c0_3 = arith.constant 0 : index
    %c0_4 = arith.constant 0 : index
    %c0_5 = arith.constant 0 : index
    %5 = vector.load %arg1[%c0_2, %c0_3, %c0_4, %c0_5] : memref<3x4x32x8xf32, #tpu.memory_space<vmem>>, vector<1x4x32x8xf32>
    %6 = vector.shape_cast %5 : vector<1x4x32x8xf32> to vector<4x32x8xf32>
    "tpu.trace_start"() <{level = 10 : i32, message = "hnc,hcd->hnd"}> : () -> ()
    %cst = arith.constant dense<0.000000e+00> : vector<4x16x8xf32>
    %7 = tpu.matmul %4, %6, %cst {dimension_numbers = #tpu.dot_dimension_numbers<[2], [1], [1], [2], [0, 0, 0, 1, 1, 2], [0], [0]>} : vector<4x16x32xf32>, vector<4x32x8xf32>, vector<4x16x8xf32> -> vector<4x16x8xf32>
    "tpu.trace_stop"() : () -> ()
    %8 = vector.shape_cast %7 : vector<4x16x8xf32> to vector<8x8x8xf32>
    %c1 = arith.constant 1 : index
    %c0_6 = arith.constant 0 : index
    %c0_7 = arith.constant 0 : index
    %c0_8 = arith.constant 0 : index
    %9 = vector.load %arg1[%c1, %c0_6, %c0_7, %c0_8] : memref<3x4x32x8xf32, #tpu.memory_space<vmem>>, vector<1x4x32x8xf32>
    %10 = vector.shape_cast %9 : vector<1x4x32x8xf32> to vector<4x32x8xf32>
    "tpu.trace_start"() <{level = 10 : i32, message = "hnc,hcd->hnd"}> : () -> ()
    %cst_9 = arith.constant dense<0.000000e+00> : vector<4x16x8xf32>
    %11 = tpu.matmul %4, %10, %cst_9 {dimension_numbers = #tpu.dot_dimension_numbers<[2], [1], [1], [2], [0, 0, 0, 1, 1, 2], [0], [0]>} : vector<4x16x32xf32>, vector<4x32x8xf32>, vector<4x16x8xf32> -> vector<4x16x8xf32>
    "tpu.trace_stop"() : () -> ()
    %12 = vector.shape_cast %11 : vector<4x16x8xf32> to vector<8x8x8xf32>
    %c2 = arith.constant 2 : index
    %c0_10 = arith.constant 0 : index
    %c0_11 = arith.constant 0 : index
    %c0_12 = arith.constant 0 : index
    %13 = vector.load %arg1[%c2, %c0_10, %c0_11, %c0_12] : memref<3x4x32x8xf32, #tpu.memory_space<vmem>>, vector<1x4x32x8xf32>
    %14 = vector.shape_cast %13 : vector<1x4x32x8xf32> to vector<4x32x8xf32>
    "tpu.trace_start"() <{level = 10 : i32, message = "hnc,hcd->hnd"}> : () -> ()
    %cst_13 = arith.constant dense<0.000000e+00> : vector<4x16x8xf32>
    %15 = tpu.matmul %4, %14, %cst_13 {dimension_numbers = #tpu.dot_dimension_numbers<[2], [1], [1], [2], [0, 0, 0, 1, 1, 2], [0], [0]>} : vector<4x16x32xf32>, vector<4x32x8xf32>, vector<4x16x8xf32> -> vector<4x16x8xf32>
    "tpu.trace_stop"() : () -> ()
    %16 = vector.shape_cast %15 : vector<4x16x8xf32> to vector<8x8x8xf32>
    "tpu.trace_start"() <{level = 10 : i32, message = "nqd,nkd->nqk"}> : () -> ()
    %cst_14 = arith.constant dense<0.000000e+00> : vector<8x8x8xf32>
    %17 = tpu.matmul %8, %12, %cst_14 {dimension_numbers = #tpu.dot_dimension_numbers<[2], [2], [1], [1], [0, 0, 0, 1, 1, 1], [0], [0]>} : vector<8x8x8xf32>, vector<8x8x8xf32>, vector<8x8x8xf32> -> vector<8x8x8xf32>
    "tpu.trace_stop"() : () -> ()
    %cst_15 = arith.constant 0.176776692 : f32
    %18 = vector.broadcast %cst_15 : f32 to vector<8x8x8xf32>
    %19 = arith.mulf %17, %18 : vector<8x8x8xf32>
    %20 = tpu.iota {dimensions = array<i32: 0>} : vector<8x8xi32>
    %21 = tpu.iota {dimensions = array<i32: 1>} : vector<8x8xi32>
    %22 = arith.cmpi sle, %21, %20 : vector<8x8xi32>
    %23 = vector.shape_cast %22 : vector<8x8xi1> to vector<1x8x8xi1>
    %cst_16 = arith.constant 0xFF800000 : f32
    %24 = vector.shape_cast %23 : vector<1x8x8xi1> to vector<1x8x8xi1>
    %25 = vector.broadcast %24 : vector<1x8x8xi1> to vector<8x8x8xi1>
    %26 = vector.broadcast %cst_16 : f32 to vector<8x8x8xf32>
    %27 = arith.select %25, %19, %26 : vector<8x8x8xi1>, vector<8x8x8xf32>
    %cst_17 = arith.constant dense<0xFF800000> : vector<8x8xf32>
    %28 = vector.multi_reduction <maximumf>, %27, %cst_17 [2] : vector<8x8x8xf32> to vector<8x8xf32>
    %29 = vector.shape_cast %28 : vector<8x8xf32> to vector<8x8x1xf32>
    %30 = vector.broadcast %29 : vector<8x8x1xf32> to vector<8x8x8xf32>
    %31 = arith.subf %27, %30 : vector<8x8x8xf32>
    %32 = math.exp %31 : vector<8x8x8xf32>
    %cst_18 = arith.constant dense<0.000000e+00> : vector<8x8xf32>
    %33 = vector.multi_reduction <add>, %32, %cst_18 [2] : vector<8x8x8xf32> to vector<8x8xf32>
    %34 = vector.shape_cast %33 : vector<8x8xf32> to vector<8x8x1xf32>
    %35 = tpu.reciprocal %34 : vector<8x8x1xf32> -> vector<8x8x1xf32>
    %36 = vector.broadcast %35 : vector<8x8x1xf32> to vector<8x8x8xf32>
    %37 = arith.mulf %32, %36 : vector<8x8x8xf32>
    "tpu.trace_start"() <{level = 10 : i32, message = "nqk,nkd->nqd"}> : () -> ()
    %cst_19 = arith.constant dense<0.000000e+00> : vector<8x8x8xf32>
    %38 = tpu.matmul %37, %16, %cst_19 {dimension_numbers = #tpu.dot_dimension_numbers<[2], [1], [1], [2], [0, 0, 0, 1, 1, 2], [0], [0]>} : vector<8x8x8xf32>, vector<8x8x8xf32>, vector<8x8x8xf32> -> vector<8x8x8xf32>
    "tpu.trace_stop"() : () -> ()
    %39 = vector.shape_cast %38 : vector<8x8x8xf32> to vector<4x16x8xf32>
    %40 = tpu.iota {dimensions = array<i32: 0>} : vector<4x8x32xi32>
    %41 = tpu.iota {dimensions = array<i32: 1>} : vector<4x8x32xi32>
    %42 = tpu.iota {dimensions = array<i32: 2>} : vector<4x8x32xi32>
    %c8_i32 = arith.constant 8 : i32
    %43 = vector.broadcast %c8_i32 : i32 to vector<4x8x32xi32>
    %44 = arith.muli %40, %43 : vector<4x8x32xi32>
    %45 = arith.addi %41, %44 : vector<4x8x32xi32>
    %46 = arith.cmpi eq, %42, %45 : vector<4x8x32xi32>
    %47 = arith.extui %46 : vector<4x8x32xi1> to vector<4x8x32xi32>
    %48 = arith.sitofp %47 : vector<4x8x32xi32> to vector<4x8x32xf32>
    "tpu.trace_start"() <{level = 10 : i32, message = "hnd,hdf->hnf"}> : () -> ()
    %cst_20 = arith.constant dense<0.000000e+00> : vector<4x16x32xf32>
    %49 = tpu.matmul %39, %48, %cst_20 {dimension_numbers = #tpu.dot_dimension_numbers<[2], [1], [1], [2], [0, 0, 0, 1, 1, 2], [0], [0]>} : vector<4x16x8xf32>, vector<4x8x32xf32>, vector<4x16x32xf32> -> vector<4x16x32xf32>
    "tpu.trace_stop"() : () -> ()
    %cst_21 = arith.constant dense<0.000000e+00> : vector<16x32xf32>
    %50 = vector.multi_reduction <add>, %49, %cst_21 [0] : vector<4x16x32xf32> to vector<16x32xf32>
    %c0_22 = arith.constant 0 : index
    %c0_23 = arith.constant 0 : index
    %51 = vector.load %arg2[%c0_22, %c0_23] : memref<16x32xf32, #tpu.memory_space<vmem>>, vector<16x32xf32>
    tpu.vector_store %arg2[%c0_22, %c0_23], %50 {strides = array<i32>} : memref<16x32xf32, #tpu.memory_space<vmem>>, vector<16x32xf32>,
    return
  }
}

</mosaic_0001>

<llo_original>
// kernel: multi_head_attention.1
$region0: #{multi_head_attention.1}
  #allocation0 [shape = 'u32[]', space=smem, size = 0x4, offset = 0x4, fixed_abs, tag = 'smem constant byte address 0x4 - core index']
  #allocation1 [shape = 'u32[144,128]{1,0:T(1,128)}', space=vmem, size = 0x12000, scoped, tag = 'internal scratch']
  %s0 = inlined_call_operand.vmem [shape: f32[2,8,32], index: 0, kind: input, shape index: {}]
  %s1 = inlined_call_operand.vmem [shape: f32[3,4,32,8], index: 1, kind: input, shape index: {}]
  %s2 = inlined_call_operand.hbm [shape: f32[16,32], index: 2, kind: output, shape index: {}]
  %s3 = sld [smem:[#allocation0]]
  $region18: #{multi_head_attention.1} parent=0
    _
  %s5 = ssub.s32 1, %s3
  %s6 = scalar_select 0, %s5, %s3
  $region1: #{multi_head_attention.1} parent=0
    #allocation2 [shape = 'u8[8192]{0}', space=vmem, size = 0x2000, scoped, tag = 'output window, operand 0, single buffered']
    #allocation3 [shape = 's32[1]{0}', space=sflag, size = 0x4, scoped, tag = 'scoped memory for multi_head_attention.1']
    %7 = vsyncpa [#allocation3], 0
    // Predicated region
    $region2: #{multi_head_attention.1} parent=1 // pred_check
      _
    $region3: #{multi_head_attention.1} parent=1 // pred_check_branch
      %9 = sbr.rel (0) target = $region5
    $region4: #{multi_head_attention.1} parent=1 // pred_region
      _
    $region5: #{multi_head_attention.1} parent=1 // pred_fallthru
      _
    // Predicated region
    $region6: #{multi_head_attention.1} parent=1 // pred_check
      _
    $region7: #{multi_head_attention.1} parent=1 // pred_check_branch
      %11 = sbr.rel (0) target = $region9
    $region8: #{multi_head_attention.1} parent=1 // pred_region
      _
    $region9: #{multi_head_attention.1} parent=1 // pred_fallthru
      _
    %v12 = vld [vmem:[%s0] sm:$0xff]
    %v13 = vld [vmem:[%s0 + $0x8] sm:$0xff]
    %v14 = vld [vmem:[%s1] sm:$0xff]
    %v15 = vld [vmem:[%s1 + $0x8] sm:$0xff]
    %v16 = vld [vmem:[%s1 + $0x10] sm:$0xff]
    %v17 = vld [vmem:[%s1 + $0x18] sm:$0xff]
    %v18 = vld [vmem:[%s1 + $0x20] sm:$0xff]
    %v19 = vld [vmem:[%s1 + $0x28] sm:$0xff]
    %v20 = vld [vmem:[%s1 + $0x30] sm:$0xff]
    %v21 = vld [vmem:[%s1 + $0x38] sm:$0xff]
    %v22 = vld [vmem:[%s1 + $0x40] sm:$0xff]
    %v23 = vld [vmem:[%s1 + $0x48] sm:$0xff]
    %v24 = vld [vmem:[%s1 + $0x50] sm:$0xff]
    %v25 = vld [vmem:[%s1 + $0x58] sm:$0xff]
    %v26 = vld [vmem:[%s1 + $0x60] sm:$0xff]
    %v27 = vld [vmem:[%s1 + $0x68] sm:$0xff]
    %v28 = vld [vmem:[%s1 + $0x70] sm:$0xff]
    %v29 = vld [vmem:[%s1 + $0x78] sm:$0xff]
    %vm30 = vcmask 261120
    %v32 = vsel %vm30, %v12, 0
    %v35 = vsel %vm30, %v13, 0
    %37 = vmatprep.subr.mxu0 0.0
    %38 = vmatpush1.msra.mxu0 %v14
    %39 = vmatprep.subr.mxu0 0.0
    %40 = vmatpush1.msra.mxu0 %v15
    %41 = vmatprep.subr.mxu0 0.0
    %42 = vmatpush1.msra.mxu0 %v16
    %43 = vmatprep.subr.mxu0 0.0
    %44 = vmatpush1.msra.mxu0 %v17
    %45 = vmatprep.subr.mxu0 0.0
    %46 = vmatpush1.msra.mxu0 0.0
    %47 = vmatprep.subr.mxu0 0.0
    %48 = vmatpush1.msra.mxu0 0.0
    %49 = vmatprep.subr.mxu0 0.0
    %50 = vmatpush1.msra.mxu0 0.0
    %51 = vmatprep.subr.mxu0 0.0
    %52 = vmatpush1.msra.mxu0 0.0
    %53 = vmatprep.subr.mxu0 0.0
    %54 = vmatpush1.msra.mxu0 0.0
    %55 = vmatprep.subr.mxu0 0.0
    %56 = vmatpush1.msra.mxu0 0.0
    %57 = vmatprep.subr.mxu0 0.0
    %58 = vmatpush1.msra.mxu0 0.0
    %59 = vmatprep.subr.mxu0 0.0
    %60 = vmatpush1.msra.mxu0 0.0
    %61 = vmatprep.subr.mxu0 0.0
    %62 = vmatpush1.msra.mxu0 0.0
    %63 = vmatprep.subr.mxu0 0.0
    %64 = vmatpush1.msra.mxu0 0.0
    %65 = vmatprep.subr.mxu0 0.0
    %66 = vmatpush1.msra.mxu0 0.0
    %67 = vmatprep.subr.mxu0 0.0
    %68 = vmatpush1.msra.mxu0 0.0
    %69 = vmatprep.subr.mxu0 0.0
    %70 = vmatpush1.msra.mxu0 0.0
    %71 = vmatprep.subr.mxu0 0.0
    %72 = vmatpush1.msra.mxu0 0.0
    %73 = vmatprep.subr.mxu0 0.0
    %74 = vmatpush1.msra.mxu0 0.0
    %75 = vmatprep.subr.mxu0 0.0
    %76 = vmatpush1.msra.mxu0 0.0
    %77 = vmatprep.subr.mxu0 0.0
    %78 = vmatpush1.msra.mxu0 0.0
    %79 = vmatprep.subr.mxu0 0.0
    %80 = vmatpush1.msra.mxu0 0.0
    %81 = vmatprep.subr.mxu0 0.0
    %82 = vmatpush1.msra.mxu0 0.0
    %83 = vmatprep.subr.mxu0 0.0
    %84 = vmatpush1.msra.mxu0 0.0
    %85 = vmatprep.subr.mxu0 0.0
    %86 = vmatpush1.msra.mxu0 0.0
    %87 = vmatprep.subr.mxu0 0.0
    %88 = vmatpush1.msra.mxu0 0.0
    %89 = vmatprep.subr.mxu0 0.0
    %90 = vmatpush1.msra.mxu0 0.0
    %91 = vmatprep.subr.mxu0 0.0
    %92 = vmatpush1.msra.mxu0 0.0
    %93 = vmatprep.subr.mxu0 0.0
    %94 = vmatpush1.msra.mxu0 0.0
    %95 = vmatprep.subr.mxu0 0.0
    %96 = vmatpush1.msra.mxu0 0.0
    %97 = vmatprep.subr.mxu0 0.0
    %98 = vmatpush1.msra.mxu0 0.0
    %99 = vmatprep.subr.mxu0 0.0
    %100 = vmatpush1.msra.mxu0 0.0
    %101 = vmatprep.mubr.f32.mxu0 0.0
    %102 = vmatmul.mubr.f32.gmra.mrb[0].mxu0 %v32
    %v103 = vpop.f32.mrb[0].mxu0
    %v104 = vadd.f32 0.0, %v103
    %v105 = vpop.f32.mrb[0].mxu0
    %106 = vmatprep.mubr.f32.mxu0 0.0
    %107 = vmatmul.mubr.f32.gmra.mrb[0].mxu0 %v35
    %v108 = vpop.f32.mrb[0].mxu0
    %v109 = vadd.f32 0.0, %v108
    %v110 = vpop.f32.mrb[0].mxu0
    %111 = vdwg.mxu0
    %112 = vmatprep.subr.mxu0 0.0
    %113 = vmatpush1.msra.mxu0 %v18
    %114 = vmatprep.subr.mxu0 0.0
    %115 = vmatpush1.msra.mxu0 %v19
    %116 = vmatprep.subr.mxu0 0.0
    %117 = vmatpush1.msra.mxu0 %v20
    %118 = vmatprep.subr.mxu0 0.0
    %119 = vmatpush1.msra.mxu0 %v21
    %120 = vmatprep.subr.mxu0 0.0
    %121 = vmatpush1.msra.mxu0 0.0
    %122 = vmatprep.subr.mxu0 0.0
    %123 = vmatpush1.msra.mxu0 0.0
    %124 = vmatprep.subr.mxu0 0.0
    %125 = vmatpush1.msra.mxu0 0.0
    %126 = vmatprep.subr.mxu0 0.0
    %127 = vmatpush1.msra.mxu0 0.0
    %128 = vmatprep.subr.mxu0 0.0
    %129 = vmatpush1.msra.mxu0 0.0
    %130 = vmatprep.subr.mxu0 0.0
    %131 = vmatpush1.msra.mxu0 0.0
    %132 = vmatprep.subr.mxu0 0.0
    %133 = vmatpush1.msra.mxu0 0.0
    %134 = vmatprep.subr.mxu0 0.0
    %135 = vmatpush1.msra.mxu0 0.0
    %136 = vmatprep.subr.mxu0 0.0
    %137 = vmatpush1.msra.mxu0 0.0
    %138 = vmatprep.subr.mxu0 0.0
    %139 = vmatpush1.msra.mxu0 0.0
    %140 = vmatprep.subr.mxu0 0.0
    %141 = vmatpush1.msra.mxu0 0.0
    %142 = vmatprep.subr.mxu0 0.0
    %143 = vmatpush1.msra.mxu0 0.0
    %144 = vmatprep.subr.mxu0 0.0
    %145 = vmatpush1.msra.mxu0 0.0
    %146 = vmatprep.subr.mxu0 0.0
    %147 = vmatpush1.msra.mxu0 0.0
    %148 = vmatprep.subr.mxu0 0.0
    %149 = vmatpush1.msra.mxu0 0.0
    %150 = vmatprep.subr.mxu0 0.0
    %151 = vmatpush1.msra.mxu0 0.0
    %152 = vmatprep.subr.mxu0 0.0
    %153 = vmatpush1.msra.mxu0 0.0
    %154 = vmatprep.subr.mxu0 0.0
    %155 = vmatpush1.msra.mxu0 0.0
    %156 = vmatprep.subr.mxu0 0.0
    %157 = vmatpush1.msra.mxu0 0.0
    %158 = vmatprep.subr.mxu0 0.0
    %159 = vmatpush1.msra.mxu0 0.0
    %160 = vmatprep.subr.mxu0 0.0
    %161 = vmatpush1.msra.mxu0 0.0
    %162 = vmatprep.subr.mxu0 0.0
    %163 = vmatpush1.msra.mxu0 0.0
    %164 = vmatprep.subr.mxu0 0.0
    %165 = vmatpush1.msra.mxu0 0.0
    %166 = vmatprep.subr.mxu0 0.0
    %167 = vmatpush1.msra.mxu0 0.0
    %168 = vmatprep.subr.mxu0 0.0
    %169 = vmatpush1.msra.mxu0 0.0
    %170 = vmatprep.subr.mxu0 0.0
    %171 = vmatpush1.msra.mxu0 0.0
    %172 = vmatprep.subr.mxu0 0.0
    %173 = vmatpush1.msra.mxu0 0.0
    %174 = vmatprep.subr.mxu0 0.0
    %175 = vmatpush1.msra.mxu0 0.0
    %176 = vmatprep.mubr.f32.mxu0 0.0
    %177 = vmatmul.mubr.f32.gmra.mrb[0].mxu0 %v32
    %v178 = vpop.f32.mrb[0].mxu0
    %v179 = vadd.f32 0.0, %v178
    %v180 = vpop.f32.mrb[0].mxu0
    %181 = vmatprep.mubr.f32.mxu0 0.0
    %182 = vmatmul.mubr.f32.gmra.mrb[0].mxu0 %v35
    %v183 = vpop.f32.mrb[0].mxu0
    %v184 = vadd.f32 0.0, %v183
    %v185 = vpop.f32.mrb[0].mxu0
    %186 = vdwg.mxu0
    %187 = vmatprep.subr.mxu0 0.0
    %188 = vmatpush1.msra.mxu0 %v22
    %189 = vmatprep.subr.mxu0 0.0
    %190 = vmatpush1.msra.mxu0 %v23
    %191 = vmatprep.subr.mxu0 0.0
    %192 = vmatpush1.msra.mxu0 %v24
    %193 = vmatprep.subr.mxu0 0.0
    %194 = vmatpush1.msra.mxu0 %v25
    %195 = vmatprep.subr.mxu0 0.0
    %196 = vmatpush1.msra.mxu0 0.0
    %197 = vmatprep.subr.mxu0 0.0
    %198 = vmatpush1.msra.mxu0 0.0
    %199 = vmatprep.subr.mxu0 0.0
    %200 = vmatpush1.msra.mxu0 0.0
    %201 = vmatprep.subr.mxu0 0.0
    %202 = vmatpush1.msra.mxu0 0.0
    %203 = vmatprep.subr.mxu0 0.0
    %204 = vmatpush1.msra.mxu0 0.0
    %205 = vmatprep.subr.mxu0 0.0
    %206 = vmatpush1.msra.mxu0 0.0
    %207 = vmatprep.subr.mxu0 0.0
    %208 = vmatpush1.msra.mxu0 0.0
    %209 = vmatprep.subr.mxu0 0.0
    %210 = vmatpush1.msra.mxu0 0.0
    %211 = vmatprep.subr.mxu0 0.0
    %212 = vmatpush1.msra.mxu0 0.0
    %213 = vmatprep.subr.mxu0 0.0
    %214 = vmatpush1.msra.mxu0 0.0
    %215 = vmatprep.subr.mxu0 0.0
    %216 = vmatpush1.msra.mxu0 0.0
    %217 = vmatprep.subr.mxu0 0.0
    %218 = vmatpush1.msra.mxu0 0.0
    %219 = vmatprep.subr.mxu0 0.0
    %220 = vmatpush1.msra.mxu0 0.0
    %221 = vmatprep.subr.mxu0 0.0
    %222 = vmatpush1.msra.mxu0 0.0
    %223 = vmatprep.subr.mxu0 0.0
    %224 = vmatpush1.msra.mxu0 0.0
    %225 = vmatprep.subr.mxu0 0.0
    %226 = vmatpush1.msra.mxu0 0.0
    %227 = vmatprep.subr.mxu0 0.0
    %228 = vmatpush1.msra.mxu0 0.0
    %229 = vmatprep.subr.mxu0 0.0
    %230 = vmatpush1.msra.mxu0 0.0
    %231 = vmatprep.subr.mxu0 0.0
    %232 = vmatpush1.msra.mxu0 0.0
    %233 = vmatprep.subr.mxu0 0.0
    %234 = vmatpush1.msra.mxu0 0.0
    %235 = vmatprep.subr.mxu0 0.0
    %236 = vmatpush1.msra.mxu0 0.0
    %237 = vmatprep.subr.mxu0 0.0
    %238 = vmatpush1.msra.mxu0 0.0
    %239 = vmatprep.subr.mxu0 0.0
    %240 = vmatpush1.msra.mxu0 0.0
    %241 = vmatprep.subr.mxu0 0.0
    %242 = vmatpush1.msra.mxu0 0.0
    %243 = vmatprep.subr.mxu0 0.0
    %244 = vmatpush1.msra.mxu0 0.0
    %245 = vmatprep.subr.mxu0 0.0
    %246 = vmatpush1.msra.mxu0 0.0
    %247 = vmatprep.subr.mxu0 0.0
    %248 = vmatpush1.msra.mxu0 0.0
    %249 = vmatprep.subr.mxu0 0.0
    %250 = vmatpush1.msra.mxu0 0.0
    %251 = vmatprep.mubr.f32.mxu0 0.0
    %252 = vmatmul.mubr.f32.gmra.mrb[0].mxu0 %v32
    %v253 = vpop.f32.mrb[0].mxu0
    %v254 = vadd.f32 0.0, %v253
    %v255 = vpop.f32.mrb[0].mxu0
    %256 = vmatprep.mubr.f32.mxu0 0.0
    %257 = vmatmul.mubr.f32.gmra.mrb[0].mxu0 %v35
    %v258 = vpop.f32.mrb[0].mxu0
    %v259 = vadd.f32 0.0, %v258
    %v260 = vpop.f32.mrb[0].mxu0
    %261 = vdwg.mxu0
    %262 = vmatprep.subr.mxu0 0.0
    %263 = vmatpush1.msra.mxu0 %v26
    %264 = vmatprep.subr.mxu0 0.0
    %265 = vmatpush1.msra.mxu0 %v27
    %266 = vmatprep.subr.mxu0 0.0
    %267 = vmatpush1.msra.mxu0 %v28
    %268 = vmatprep.subr.mxu0 0.0
    %269 = vmatpush1.msra.mxu0 %v29
    %270 = vmatprep.subr.mxu0 0.0
    %271 = vmatpush1.msra.mxu0 0.0
    %272 = vmatprep.subr.mxu0 0.0
    %273 = vmatpush1.msra.mxu0 0.0
    %274 = vmatprep.subr.mxu0 0.0
    %275 = vmatpush1.msra.mxu0 0.0
    %276 = vmatprep.subr.mxu0 0.0
    %277 = vmatpush1.msra.mxu0 0.0
    %278 = vmatprep.subr.mxu0 0.0
    %279 = vmatpush1.msra.mxu0 0.0
    %280 = vmatprep.subr.mxu0 0.0
    %281 = vmatpush1.msra.mxu0 0.0
    %282 = vmatprep.subr.mxu0 0.0
    %283 = vmatpush1.msra.mxu0 0.0
    %284 = vmatprep.subr.mxu0 0.0
    %285 = vmatpush1.msra.mxu0 0.0
    %286 = vmatprep.subr.mxu0 0.0
    %287 = vmatpush1.msra.mxu0 0.0
    %288 = vmatprep.subr.mxu0 0.0
    %289 = vmatpush1.msra.mxu0 0.0
    %290 = vmatprep.subr.mxu0 0.0
    %291 = vmatpush1.msra.mxu0 0.0
    %292 = vmatprep.subr.mxu0 0.0
    %293 = vmatpush1.msra.mxu0 0.0
    %294 = vmatprep.subr.mxu0 0.0
    %295 = vmatpush1.msra.mxu0 0.0
    %296 = vmatprep.subr.mxu0 0.0
    %297 = vmatpush1.msra.mxu0 0.0
    %298 = vmatprep.subr.mxu0 0.0
    %299 = vmatpush1.msra.mxu0 0.0
    %300 = vmatprep.subr.mxu0 0.0
    %301 = vmatpush1.msra.mxu0 0.0
    %302 = vmatprep.subr.mxu0 0.0
    %303 = vmatpush1.msra.mxu0 0.0
    %304 = vmatprep.subr.mxu0 0.0
    %305 = vmatpush1.msra.mxu0 0.0
    %306 = vmatprep.subr.mxu0 0.0
    %307 = vmatpush1.msra.mxu0 0.0
    %308 = vmatprep.subr.mxu0 0.0
    %309 = vmatpush1.msra.mxu0 0.0
    %310 = vmatprep.subr.mxu0 0.0
    %311 = vmatpush1.msra.mxu0 0.0
    %312 = vmatprep.subr.mxu0 0.0
    %313 = vmatpush1.msra.mxu0 0.0
    %314 = vmatprep.subr.mxu0 0.0
    %315 = vmatpush1.msra.mxu0 0.0
    %316 = vmatprep.subr.mxu0 0.0
    %317 = vmatpush1.msra.mxu0 0.0
    %318 = vmatprep.subr.mxu0 0.0
    %319 = vmatpush1.msra.mxu0 0.0
    %320 = vmatprep.subr.mxu0 0.0
    %321 = vmatpush1.msra.mxu0 0.0
    %322 = vmatprep.subr.mxu0 0.0
    %323 = vmatpush1.msra.mxu0 0.0
    %324 = vmatprep.subr.mxu0 0.0
    %325 = vmatpush1.msra.mxu0 0.0
    %326 = vmatprep.mubr.f32.mxu0 0.0
    %327 = vmatmul.mubr.f32.gmra.mrb[0].mxu0 %v32
    %v328 = vpop.f32.mrb[0].mxu0
    %v329 = vadd.f32 0.0, %v328
    %v330 = vpop.f32.mrb[0].mxu0
    %331 = vmatprep.mubr.f32.mxu0 0.0
    %332 = vmatmul.mubr.f32.gmra.mrb[0].mxu0 %v35
    %v333 = vpop.f32.mrb[0].mxu0
    %v334 = vadd.f32 0.0, %v333
    %v335 = vpop.f32.mrb[0].mxu0
    %336 = vdwg.mxu0
    %s337 = scalar_lea.vmem %s1, 128
    %v338 = vld [vmem:[%s337] sm:$0xff]
    %v339 = vld [vmem:[%s337 + $0x8] sm:$0xff]
    %v340 = vld [vmem:[%s337 + $0x10] sm:$0xff]
    %v341 = vld [vmem:[%s337 + $0x18] sm:$0xff]
    %v342 = vld [vmem:[%s337 + $0x20] sm:$0xff]
    %v343 = vld [vmem:[%s337 + $0x28] sm:$0xff]
    %v344 = vld [vmem:[%s337 + $0x30] sm:$0xff]
    %v345 = vld [vmem:[%s337 + $0x38] sm:$0xff]
    %v346 = vld [vmem:[%s337 + $0x40] sm:$0xff]
    %v347 = vld [vmem:[%s337 + $0x48] sm:$0xff]
    %v348 = vld [vmem:[%s337 + $0x50] sm:$0xff]
    %v349 = vld [vmem:[%s337 + $0x58] sm:$0xff]
    %v350 = vld [vmem:[%s337 + $0x60] sm:$0xff]
    %v351 = vld [vmem:[%s337 + $0x68] sm:$0xff]
    %v352 = vld [vmem:[%s337 + $0x70] sm:$0xff]
    %v353 = vld [vmem:[%s337 + $0x78] sm:$0xff]
    %354 = vmatprep.subr.mxu0 0.0
    %355 = vmatpush1.msra.mxu0 %v338
    %356 = vmatprep.subr.mxu0 0.0
    %357 = vmatpush1.msra.mxu0 %v339
    %358 = vmatprep.subr.mxu0 0.0
    %359 = vmatpush1.msra.mxu0 %v340
    %360 = vmatprep.subr.mxu0 0.0
    %361 = vmatpush1.msra.mxu0 %v341
    %362 = vmatprep.subr.mxu0 0.0
    %363 = vmatpush1.msra.mxu0 0.0
    %364 = vmatprep.subr.mxu0 0.0
    %365 = vmatpush1.msra.mxu0 0.0
    %366 = vmatprep.subr.mxu0 0.0
    %367 = vmatpush1.msra.mxu0 0.0
    %368 = vmatprep.subr.mxu0 0.0
    %369 = vmatpush1.msra.mxu0 0.0
    %370 = vmatprep.subr.mxu0 0.0
    %371 = vmatpush1.msra.mxu0 0.0
    %372 = vmatprep.subr.mxu0 0.0
    %373 = vmatpush1.msra.mxu0 0.0
    %374 = vmatprep.subr.mxu0 0.0
    %375 = vmatpush1.msra.mxu0 0.0
    %376 = vmatprep.subr.mxu0 0.0
    %377 = vmatpush1.msra.mxu0 0.0
    %378 = vmatprep.subr.mxu0 0.0
    %379 = vmatpush1.msra.mxu0 0.0
    %380 = vmatprep.subr.mxu0 0.0
    %381 = vmatpush1.msra.mxu0 0.0
    %382 = vmatprep.subr.mxu0 0.0
    %383 = vmatpush1.msra.mxu0 0.0
    %384 = vmatprep.subr.mxu0 0.0
    %385 = vmatpush1.msra.mxu0 0.0
    %386 = vmatprep.subr.mxu0 0.0
    %387 = vmatpush1.msra.mxu0 0.0
    %388 = vmatprep.subr.mxu0 0.0
    %389 = vmatpush1.msra.mxu0 0.0
    %390 = vmatprep.subr.mxu0 0.0
    %391 = vmatpush1.msra.mxu0 0.0
    %392 = vmatprep.subr.mxu0 0.0
    %393 = vmatpush1.msra.mxu0 0.0
    %394 = vmatprep.subr.mxu0 0.0
    %395 = vmatpush1.msra.mxu0 0.0
    %396 = vmatprep.subr.mxu0 0.0
    %397 = vmatpush1.msra.mxu0 0.0
    %398 = vmatprep.subr.mxu0 0.0
    %399 = vmatpush1.msra.mxu0 0.0
    %400 = vmatprep.subr.mxu0 0.0
    %401 = vmatpush1.msra.mxu0 0.0
    %402 = vmatprep.subr.mxu0 0.0
    %403 = vmatpush1.msra.mxu0 0.0
    %404 = vmatprep.subr.mxu0 0.0
    %405 = vmatpush1.msra.mxu0 0.0
    %406 = vmatprep.subr.mxu0 0.0
    %407 = vmatpush1.msra.mxu0 0.0
    %408 = vmatprep.subr.mxu0 0.0
    %409 = vmatpush1.msra.mxu0 0.0
    %410 = vmatprep.subr.mxu0 0.0
    %411 = vmatpush1.msra.mxu0 0.0
    %412 = vmatprep.subr.mxu0 0.0
    %413 = vmatpush1.msra.mxu0 0.0
    %414 = vmatprep.subr.mxu0 0.0
    %415 = vmatpush1.msra.mxu0 0.0
    %416 = vmatprep.subr.mxu0 0.0
    %417 = vmatpush1.msra.mxu0 0.0
    %418 = vmatprep.mubr.f32.mxu0 0.0
    %419 = vmatmul.mubr.f32.gmra.mrb[0].mxu0 %v32
    %v420 = vpop.f32.mrb[0].mxu0
    %v421 = vadd.f32 0.0, %v420
    %v422 = vpop.f32.mrb[0].mxu0
    %423 = vmatprep.mubr.f32.mxu0 0.0
    %424 = vmatmul.mubr.f32.gmra.mrb[0].mxu0 %v35
    %v425 = vpop.f32.mrb[0].mxu0
    %v426 = vadd.f32 0.0, %v425
    %v427 = vpop.f32.mrb[0].mxu0
    %428 = vdwg.mxu0
    %429 = vmatprep.subr.mxu0 0.0
    %430 = vmatpush1.msra.mxu0 %v342
    %431 = vmatprep.subr.mxu0 0.0
    %432 = vmatpush1.msra.mxu0 %v343
    %433 = vmatprep.subr.mxu0 0.0
    %434 = vmatpush1.msra.mxu0 %v344
    %435 = vmatprep.subr.mxu0 0.0
    %436 = vmatpush1.msra.mxu0 %v345
    %437 = vmatprep.subr.mxu0 0.0
    %438 = vmatpush1.msra.mxu0 0.0
    %439 = vmatprep.subr.mxu0 0.0
    %440 = vmatpush1.msra.mxu0 0.0
    %441 = vmatprep.subr.mxu0 0.0
    %442 = vmatpush1.msra.mxu0 0.0
    %443 = vmatprep.subr.mxu0 0.0
    %444 = vmatpush1.msra.mxu0 0.0
    %445 = vmatprep.subr.mxu0 0.0
    %446 = vmatpush1.msra.mxu0 0.0
    %447 = vmatprep.subr.mxu0 0.0
    %448 = vmatpush1.msra.mxu0 0.0
    %449 = vmatprep.subr.mxu0 0.0
    %450 = vmatpush1.msra.mxu0 0.0
    %451 = vmatprep.subr.mxu0 0.0
    %452 = vmatpush1.msra.mxu0 0.0
    %453 = vmatprep.subr.mxu0 0.0
    %454 = vmatpush1.msra.mxu0 0.0
    %455 = vmatprep.subr.mxu0 0.0
    %456 = vmatpush1.msra.mxu0 0.0
    %457 = vmatprep.subr.mxu0 0.0
    %458 = vmatpush1.msra.mxu0 0.0
    %459 = vmatprep.subr.mxu0 0.0
    %460 = vmatpush1.msra.mxu0 0.0
    %461 = vmatprep.subr.mxu0 0.0
    %462 = vmatpush1.msra.mxu0 0.0
    %463 = vmatprep.subr.mxu0 0.0
    %464 = vmatpush1.msra.mxu0 0.0
    %465 = vmatprep.subr.mxu0 0.0
    %466 = vmatpush1.msra.mxu0 0.0
    %467 = vmatprep.subr.mxu0 0.0
    %468 = vmatpush1.msra.mxu0 0.0
    %469 = vmatprep.subr.mxu0 0.0
    %470 = vmatpush1.msra.mxu0 0.0
    %471 = vmatprep.subr.mxu0 0.0
    %472 = vmatpush1.msra.mxu0 0.0
    %473 = vmatprep.subr.mxu0 0.0
    %474 = vmatpush1.msra.mxu0 0.0
    %475 = vmatprep.subr.mxu0 0.0
    %476 = vmatpush1.msra.mxu0 0.0
    %477 = vmatprep.subr.mxu0 0.0
    %478 = vmatpush1.msra.mxu0 0.0
    %479 = vmatprep.subr.mxu0 0.0
    %480 = vmatpush1.msra.mxu0 0.0
    %481 = vmatprep.subr.mxu0 0.0
    %482 = vmatpush1.msra.mxu0 0.0
    %483 = vmatprep.subr.mxu0 0.0
    %484 = vmatpush1.msra.mxu0 0.0
    %485 = vmatprep.subr.mxu0 0.0
    %486 = vmatpush1.msra.mxu0 0.0
    %487 = vmatprep.subr.mxu0 0.0
    %488 = vmatpush1.msra.mxu0 0.0
    %489 = vmatprep.subr.mxu0 0.0
    %490 = vmatpush1.msra.mxu0 0.0
    %491 = vmatprep.subr.mxu0 0.0
    %492 = vmatpush1.msra.mxu0 0.0
    %493 = vmatprep.mubr.f32.mxu0 0.0
    %494 = vmatmul.mubr.f32.gmra.mrb[0].mxu0 %v32
    %v495 = vpop.f32.mrb[0].mxu0
    %v496 = vadd.f32 0.0, %v495
    %v497 = vpop.f32.mrb[0].mxu0
    %498 = vmatprep.mubr.f32.mxu0 0.0
    %499 = vmatmul.mubr.f32.gmra.mrb[0].mxu0 %v35
    %v500 = vpop.f32.mrb[0].mxu0
    %v501 = vadd.f32 0.0, %v500
    %v502 = vpop.f32.mrb[0].mxu0
    %503 = vdwg.mxu0
    %504 = vmatprep.subr.mxu0 0.0
    %505 = vmatpush1.msra.mxu0 %v346
    %506 = vmatprep.subr.mxu0 0.0
    %507 = vmatpush1.msra.mxu0 %v347
    %508 = vmatprep.subr.mxu0 0.0
    %509 = vmatpush1.msra.mxu0 %v348
    %510 = vmatprep.subr.mxu0 0.0
    %511 = vmatpush1.msra.mxu0 %v349
    %512 = vmatprep.subr.mxu0 0.0
    %513 = vmatpush1.msra.mxu0 0.0
    %514 = vmatprep.subr.mxu0 0.0
    %515 = vmatpush1.msra.mxu0 0.0
    %516 = vmatprep.subr.mxu0 0.0
    %517 = vmatpush1.msra.mxu0 0.0
    %518 = vmatprep.subr.mxu0 0.0
    %519 = vmatpush1.msra.mxu0 0.0
    %520 = vmatprep.subr.mxu0 0.0
    %521 = vmatpush1.msra.mxu0 0.0
    %522 = vmatprep.subr.mxu0 0.0
    %523 = vmatpush1.msra.mxu0 0.0
    %524 = vmatprep.subr.mxu0 0.0
    %525 = vmatpush1.msra.mxu0 0.0
    %526 = vmatprep.subr.mxu0 0.0
    %527 = vmatpush1.msra.mxu0 0.0
    %528 = vmatprep.subr.mxu0 0.0
    %529 = vmatpush1.msra.mxu0 0.0
    %530 = vmatprep.subr.mxu0 0.0
    %531 = vmatpush1.msra.mxu0 0.0
    %532 = vmatprep.subr.mxu0 0.0
    %533 = vmatpush1.msra.mxu0 0.0
    %534 = vmatprep.subr.mxu0 0.0
    %535 = vmatpush1.msra.mxu0 0.0
    %536 = vmatprep.subr.mxu0 0.0
    %537 = vmatpush1.msra.mxu0 0.0
    %538 = vmatprep.subr.mxu0 0.0
    %539 = vmatpush1.msra.mxu0 0.0
    %540 = vmatprep.subr.mxu0 0.0
    %541 = vmatpush1.msra.mxu0 0.0
    %542 = vmatprep.subr.mxu0 0.0
    %543 = vmatpush1.msra.mxu0 0.0
    %544 = vmatprep.subr.mxu0 0.0
    %545 = vmatpush1.msra.mxu0 0.0
    %546 = vmatprep.subr.mxu0 0.0
    %547 = vmatpush1.msra.mxu0 0.0
    %548 = vmatprep.subr.mxu0 0.0
    %549 = vmatpush1.msra.mxu0 0.0
    %550 = vmatprep.subr.mxu0 0.0
    %551 = vmatpush1.msra.mxu0 0.0
    %552 = vmatprep.subr.mxu0 0.0
    %553 = vmatpush1.msra.mxu0 0.0
    %554 = vmatprep.subr.mxu0 0.0
    %555 = vmatpush1.msra.mxu0 0.0
    %556 = vmatprep.subr.mxu0 0.0
    %557 = vmatpush1.msra.mxu0 0.0
    %558 = vmatprep.subr.mxu0 0.0
    %559 = vmatpush1.msra.mxu0 0.0
    %560 = vmatprep.subr.mxu0 0.0
    %561 = vmatpush1.msra.mxu0 0.0
    %562 = vmatprep.subr.mxu0 0.0
    %563 = vmatpush1.msra.mxu0 0.0
    %564 = vmatprep.subr.mxu0 0.0
    %565 = vmatpush1.msra.mxu0 0.0
    %566 = vmatprep.subr.mxu0 0.0
    %567 = vmatpush1.msra.mxu0 0.0
    %568 = vmatprep.mubr.f32.mxu0 0.0
    %569 = vmatmul.mubr.f32.gmra.mrb[0].mxu0 %v32
    %v570 = vpop.f32.mrb[0].mxu0
    %v571 = vadd.f32 0.0, %v570
    %v572 = vpop.f32.mrb[0].mxu0
    %573 = vmatprep.mubr.f32.mxu0 0.0
    %574 = vmatmul.mubr.f32.gmra.mrb[0].mxu0 %v35
    %v575 = vpop.f32.mrb[0].mxu0
    %v576 = vadd.f32 0.0, %v575
    %v577 = vpop.f32.mrb[0].mxu0
    %578 = vdwg.mxu0
    %579 = vmatprep.subr.mxu0 0.0
    %580 = vmatpush1.msra.mxu0 %v350
    %581 = vmatprep.subr.mxu0 0.0
    %582 = vmatpush1.msra.mxu0 %v351
    %583 = vmatprep.subr.mxu0 0.0
    %584 = vmatpush1.msra.mxu0 %v352
    %585 = vmatprep.subr.mxu0 0.0
    %586 = vmatpush1.msra.mxu0 %v353
    %587 = vmatprep.subr.mxu0 0.0
    %588 = vmatpush1.msra.mxu0 0.0
    %589 = vmatprep.subr.mxu0 0.0
    %590 = vmatpush1.msra.mxu0 0.0
    %591 = vmatprep.subr.mxu0 0.0
    %592 = vmatpush1.msra.mxu0 0.0
    %593 = vmatprep.subr.mxu0 0.0
    %594 = vmatpush1.msra.mxu0 0.0
    %595 = vmatprep.subr.mxu0 0.0
    %596 = vmatpush1.msra.mxu0 0.0
    %597 = vmatprep.subr.mxu0 0.0
    %598 = vmatpush1.msra.mxu0 0.0
    %599 = vmatprep.subr.mxu0 0.0
    %600 = vmatpush1.msra.mxu0 0.0
    %601 = vmatprep.subr.mxu0 0.0
    %602 = vmatpush1.msra.mxu0 0.0
    %603 = vmatprep.subr.mxu0 0.0
    %604 = vmatpush1.msra.mxu0 0.0
    %605 = vmatprep.subr.mxu0 0.0
    %606 = vmatpush1.msra.mxu0 0.0
    %607 = vmatprep.subr.mxu0 0.0
    %608 = vmatpush1.msra.mxu0 0.0
    %609 = vmatprep.subr.mxu0 0.0
    %610 = vmatpush1.msra.mxu0 0.0
    %611 = vmatprep.subr.mxu0 0.0
    %612 = vmatpush1.msra.mxu0 0.0
    %613 = vmatprep.subr.mxu0 0.0
    %614 = vmatpush1.msra.mxu0 0.0
    %615 = vmatprep.subr.mxu0 0.0
    %616 = vmatpush1.msra.mxu0 0.0
    %617 = vmatprep.subr.mxu0 0.0
    %618 = vmatpush1.msra.mxu0 0.0
    %619 = vmatprep.subr.mxu0 0.0
    %620 = vmatpush1.msra.mxu0 0.0
    %621 = vmatprep.subr.mxu0 0.0
    %622 = vmatpush1.msra.mxu0 0.0
    %623 = vmatprep.subr.mxu0 0.0
    %624 = vmatpush1.msra.mxu0 0.0
    %625 = vmatprep.subr.mxu0 0.0
    %626 = vmatpush1.msra.mxu0 0.0
    %627 = vmatprep.subr.mxu0 0.0
    %628 = vmatpush1.msra.mxu0 0.0
    %629 = vmatprep.subr.mxu0 0.0
    %630 = vmatpush1.msra.mxu0 0.0
    %631 = vmatprep.subr.mxu0 0.0
    %632 = vmatpush1.msra.mxu0 0.0
    %633 = vmatprep.subr.mxu0 0.0
    %634 = vmatpush1.msra.mxu0 0.0
    %635 = vmatprep.subr.mxu0 0.0
    %636 = vmatpush1.msra.mxu0 0.0
    %637 = vmatprep.subr.mxu0 0.0
    %638 = vmatpush1.msra.mxu0 0.0
    %639 = vmatprep.subr.mxu0 0.0
    %640 = vmatpush1.msra.mxu0 0.0
    %641 = vmatprep.subr.mxu0 0.0
    %642 = vmatpush1.msra.mxu0 0.0
    %643 = vmatprep.mubr.f32.mxu0 0.0
    %644 = vmatmul.mubr.f32.gmra.mrb[0].mxu0 %v32
    %v645 = vpop.f32.mrb[0].mxu0
    %v646 = vadd.f32 0.0, %v645
    %v647 = vpop.f32.mrb[0].mxu0
    %648 = vmatprep.mubr.f32.mxu0 0.0
    %649 = vmatmul.mubr.f32.gmra.mrb[0].mxu0 %v35
    %v650 = vpop.f32.mrb[0].mxu0
    %v651 = vadd.f32 0.0, %v650
    %v652 = vpop.f32.mrb[0].mxu0
    %653 = vdwg.mxu0
    %s654 = scalar_lea.vmem %s1, 256
    %v655 = vld [vmem:[%s654] sm:$0xff]
    %v656 = vld [vmem:[%s654 + $0x8] sm:$0xff]
    %v657 = vld [vmem:[%s654 + $0x10] sm:$0xff]
    %v658 = vld [vmem:[%s654 + $0x18] sm:$0xff]
    %v659 = vld [vmem:[%s654 + $0x20] sm:$0xff]
    %v660 = vld [vmem:[%s654 + $0x28] sm:$0xff]
    %v661 = vld [vmem:[%s654 + $0x30] sm:$0xff]
    %v662 = vld [vmem:[%s654 + $0x38] sm:$0xff]
    %v663 = vld [vmem:[%s654 + $0x40] sm:$0xff]
    %v664 = vld [vmem:[%s654 + $0x48] sm:$0xff]
    %v665 = vld [vmem:[%s654 + $0x50] sm:$0xff]
    %v666 = vld [vmem:[%s654 + $0x58] sm:$0xff]
    %v667 = vld [vmem:[%s654 + $0x60] sm:$0xff]
    %v668 = vld [vmem:[%s654 + $0x68] sm:$0xff]
    %v669 = vld [vmem:[%s654 + $0x70] sm:$0xff]
    %v670 = vld [vmem:[%s654 + $0x78] sm:$0xff]
    %671 = vmatprep.subr.mxu0 0.0
    %672 = vmatpush1.msra.mxu0 %v655
    %673 = vmatprep.subr.mxu0 0.0
    %674 = vmatpush1.msra.mxu0 %v656
    %675 = vmatprep.subr.mxu0 0.0
    %676 = vmatpush1.msra.mxu0 %v657
    %677 = vmatprep.subr.mxu0 0.0
    %678 = vmatpush1.msra.mxu0 %v658
    %679 = vmatprep.subr.mxu0 0.0
    %680 = vmatpush1.msra.mxu0 0.0
    %681 = vmatprep.subr.mxu0 0.0
    %682 = vmatpush1.msra.mxu0 0.0
    %683 = vmatprep.subr.mxu0 0.0
    %684 = vmatpush1.msra.mxu0 0.0
    %685 = vmatprep.subr.mxu0 0.0
    %686 = vmatpush1.msra.mxu0 0.0
    %687 = vmatprep.subr.mxu0 0.0
    %688 = vmatpush1.msra.mxu0 0.0
    %689 = vmatprep.subr.mxu0 0.0
    %690 = vmatpush1.msra.mxu0 0.0
    %691 = vmatprep.subr.mxu0 0.0
    %692 = vmatpush1.msra.mxu0 0.0
    %693 = vmatprep.subr.mxu0 0.0
    %694 = vmatpush1.msra.mxu0 0.0
    %695 = vmatprep.subr.mxu0 0.0
    %696 = vmatpush1.msra.mxu0 0.0
    %697 = vmatprep.subr.mxu0 0.0
    %698 = vmatpush1.msra.mxu0 0.0
    %699 = vmatprep.subr.mxu0 0.0
    %700 = vmatpush1.msra.mxu0 0.0
    %701 = vmatprep.subr.mxu0 0.0
    %702 = vmatpush1.msra.mxu0 0.0
    %703 = vmatprep.subr.mxu0 0.0
    %704 = vmatpush1.msra.mxu0 0.0
    %705 = vmatprep.subr.mxu0 0.0
    %706 = vmatpush1.msra.mxu0 0.0
    %707 = vmatprep.subr.mxu0 0.0
    %708 = vmatpush1.msra.mxu0 0.0
    %709 = vmatprep.subr.mxu0 0.0
    %710 = vmatpush1.msra.mxu0 0.0
    %711 = vmatprep.subr.mxu0 0.0
    %712 = vmatpush1.msra.mxu0 0.0
    %713 = vmatprep.subr.mxu0 0.0
    %714 = vmatpush1.msra.mxu0 0.0
    %715 = vmatprep.subr.mxu0 0.0
    %716 = vmatpush1.msra.mxu0 0.0
    %717 = vmatprep.subr.mxu0 0.0
    %718 = vmatpush1.msra.mxu0 0.0
    %719 = vmatprep.subr.mxu0 0.0
    %720 = vmatpush1.msra.mxu0 0.0
    %721 = vmatprep.subr.mxu0 0.0
    %722 = vmatpush1.msra.mxu0 0.0
    %723 = vmatprep.subr.mxu0 0.0
    %724 = vmatpush1.msra.mxu0 0.0
    %725 = vmatprep.subr.mxu0 0.0
    %726 = vmatpush1.msra.mxu0 0.0
    %727 = vmatprep.subr.mxu0 0.0
    %728 = vmatpush1.msra.mxu0 0.0
    %729 = vmatprep.subr.mxu0 0.0
    %730 = vmatpush1.msra.mxu0 0.0
    %731 = vmatprep.subr.mxu0 0.0
    %732 = vmatpush1.msra.mxu0 0.0
    %733 = vmatprep.subr.mxu0 0.0
    %734 = vmatpush1.msra.mxu0 0.0
    %735 = vmatprep.mubr.f32.mxu0 0.0
    %736 = vmatmul.mubr.f32.gmra.mrb[0].mxu0 %v32
    %v737 = vpop.f32.mrb[0].mxu0
    %v738 = vadd.f32 0.0, %v737
    %v739 = vpop.f32.mrb[0].mxu0
    %740 = vmatprep.mubr.f32.mxu0 0.0
    %741 = vmatmul.mubr.f32.gmra.mrb[0].mxu0 %v35
    %v742 = vpop.f32.mrb[0].mxu0
    %v743 = vadd.f32 0.0, %v742
    %v744 = vpop.f32.mrb[0].mxu0
    %745 = vdwg.mxu0
    %746 = vmatprep.subr.mxu0 0.0
    %747 = vmatpush1.msra.mxu0 %v659
    %748 = vmatprep.subr.mxu0 0.0
    %749 = vmatpush1.msra.mxu0 %v660
    %750 = vmatprep.subr.mxu0 0.0
    %751 = vmatpush1.msra.mxu0 %v661
    %752 = vmatprep.subr.mxu0 0.0
    %753 = vmatpush1.msra.mxu0 %v662
    %754 = vmatprep.subr.mxu0 0.0
    %755 = vmatpush1.msra.mxu0 0.0
    %756 = vmatprep.subr.mxu0 0.0
    %757 = vmatpush1.msra.mxu0 0.0
    %758 = vmatprep.subr.mxu0 0.0
    %759 = vmatpush1.msra.mxu0 0.0
    %760 = vmatprep.subr.mxu0 0.0
    %761 = vmatpush1.msra.mxu0 0.0
    %762 = vmatprep.subr.mxu0 0.0
    %763 = vmatpush1.msra.mxu0 0.0
    %764 = vmatprep.subr.mxu0 0.0
    %765 = vmatpush1.msra.mxu0 0.0
    %766 = vmatprep.subr.mxu0 0.0
    %767 = vmatpush1.msra.mxu0 0.0
    %768 = vmatprep.subr.mxu0 0.0
    %769 = vmatpush1.msra.mxu0 0.0
    %770 = vmatprep.subr.mxu0 0.0
    %771 = vmatpush1.msra.mxu0 0.0
    %772 = vmatprep.subr.mxu0 0.0
    %773 = vmatpush1.msra.mxu0 0.0
    %774 = vmatprep.subr.mxu0 0.0
    %775 = vmatpush1.msra.mxu0 0.0
    %776 = vmatprep.subr.mxu0 0.0
    %777 = vmatpush1.msra.mxu0 0.0
    %778 = vmatprep.subr.mxu0 0.0
    %779 = vmatpush1.msra.mxu0 0.0
    %780 = vmatprep.subr.mxu0 0.0
    %781 = vmatpush1.msra.mxu0 0.0
    %782 = vmatprep.subr.mxu0 0.0
    %783 = vmatpush1.msra.mxu0 0.0
    %784 = vmatprep.subr.mxu0 0.0
    %785 = vmatpush1.msra.mxu0 0.0
    %786 = vmatprep.subr.mxu0 0.0
    %787 = vmatpush1.msra.mxu0 0.0
    %788 = vmatprep.subr.mxu0 0.0
    %789 = vmatpush1.msra.mxu0 0.0
    %790 = vmatprep.subr.mxu0 0.0
    %791 = vmatpush1.msra.mxu0 0.0
    %792 = vmatprep.subr.mxu0 0.0
    %793 = vmatpush1.msra.mxu0 0.0
    %794 = vmatprep.subr.mxu0 0.0
    %795 = vmatpush1.msra.mxu0 0.0
    %796 = vmatprep.subr.mxu0 0.0
    %797 = vmatpush1.msra.mxu0 0.0
    %798 = vmatprep.subr.mxu0 0.0
    %799 = vmatpush1.msra.mxu0 0.0
    %800 = vmatprep.subr.mxu0 0.0
    %801 = vmatpush1.msra.mxu0 0.0
    %802 = vmatprep.subr.mxu0 0.0
    %803 = vmatpush1.msra.mxu0 0.0
    %804 = vmatprep.subr.mxu0 0.0
    %805 = vmatpush1.msra.mxu0 0.0
    %806 = vmatprep.subr.mxu0 0.0
    %807 = vmatpush1.msra.mxu0 0.0
    %808 = vmatprep.subr.mxu0 0.0
    %809 = vmatpush1.msra.mxu0 0.0
    %810 = vmatprep.mubr.f32.mxu0 0.0
    %811 = vmatmul.mubr.f32.gmra.mrb[0].mxu0 %v32
    %v812 = vpop.f32.mrb[0].mxu0
    %v813 = vadd.f32 0.0, %v812
    %v814 = vpop.f32.mrb[0].mxu0
    %815 = vmatprep.mubr.f32.mxu0 0.0
    %816 = vmatmul.mubr.f32.gmra.mrb[0].mxu0 %v35
    %v817 = vpop.f32.mrb[0].mxu0
    %v818 = vadd.f32 0.0, %v817
    %v819 = vpop.f32.mrb[0].mxu0
    %820 = vdwg.mxu0
    %821 = vmatprep.subr.mxu0 0.0
    %822 = vmatpush1.msra.mxu0 %v663
    %823 = vmatprep.subr.mxu0 0.0
    %824 = vmatpush1.msra.mxu0 %v664
    %825 = vmatprep.subr.mxu0 0.0
    %826 = vmatpush1.msra.mxu0 %v665
    %827 = vmatprep.subr.mxu0 0.0
    %828 = vmatpush1.msra.mxu0 %v666
    %829 = vmatprep.subr.mxu0 0.0
    %830 = vmatpush1.msra.mxu0 0.0
    %831 = vmatprep.subr.mxu0 0.0
    %832 = vmatpush1.msra.mxu0 0.0
    %833 = vmatprep.subr.mxu0 0.0
    %834 = vmatpush1.msra.mxu0 0.0
    %835 = vmatprep.subr.mxu0 0.0
    %836 = vmatpush1.msra.mxu0 0.0
    %837 = vmatprep.subr.mxu0 0.0
    %838 = vmatpush1.msra.mxu0 0.0
    %839 = vmatprep.subr.mxu0 0.0
    %840 = vmatpush1.msra.mxu0 0.0
    %841 = vmatprep.subr.mxu0 0.0
    %842 = vmatpush1.msra.mxu0 0.0
    %843 = vmatprep.subr.mxu0 0.0
    %844 = vmatpush1.msra.mxu0 0.0
    %845 = vmatprep.subr.mxu0 0.0
    %846 = vmatpush1.msra.mxu0 0.0
    %847 = vmatprep.subr.mxu0 0.0
    %848 = vmatpush1.msra.mxu0 0.0
    %849 = vmatprep.subr.mxu0 0.0
    %850 = vmatpush1.msra.mxu0 0.0
    %851 = vmatprep.subr.mxu0 0.0
    %852 = vmatpush1.msra.mxu0 0.0
    %853 = vmatprep.subr.mxu0 0.0
    %854 = vmatpush1.msra.mxu0 0.0
    %855 = vmatprep.subr.mxu0 0.0
    %856 = vmatpush1.msra.mxu0 0.0
    %857 = vmatprep.subr.mxu0 0.0
    %858 = vmatpush1.msra.mxu0 0.0
    %859 = vmatprep.subr.mxu0 0.0
    %860 = vmatpush1.msra.mxu0 0.0
    %861 = vmatprep.subr.mxu0 0.0
    %862 = vmatpush1.msra.mxu0 0.0
    %863 = vmatprep.subr.mxu0 0.0
    %864 = vmatpush1.msra.mxu0 0.0
    %865 = vmatprep.subr.mxu0 0.0
    %866 = vmatpush1.msra.mxu0 0.0
    %867 = vmatprep.subr.mxu0 0.0
    %868 = vmatpush1.msra.mxu0 0.0
    %869 = vmatprep.subr.mxu0 0.0
    %870 = vmatpush1.msra.mxu0 0.0
    %871 = vmatprep.subr.mxu0 0.0
    %872 = vmatpush1.msra.mxu0 0.0
    %873 = vmatprep.subr.mxu0 0.0
    %874 = vmatpush1.msra.mxu0 0.0
    %875 = vmatprep.subr.mxu0 0.0
    %876 = vmatpush1.msra.mxu0 0.0
    %877 = vmatprep.subr.mxu0 0.0
    %878 = vmatpush1.msra.mxu0 0.0
    %879 = vmatprep.subr.mxu0 0.0
    %880 = vmatpush1.msra.mxu0 0.0
    %881 = vmatprep.subr.mxu0 0.0
    %882 = vmatpush1.msra.mxu0 0.0
    %883 = vmatprep.subr.mxu0 0.0
    %884 = vmatpush1.msra.mxu0 0.0
    %885 = vmatprep.mubr.f32.mxu0 0.0
    %886 = vmatmul.mubr.f32.gmra.mrb[0].mxu0 %v32
    %v887 = vpop.f32.mrb[0].mxu0
    %v888 = vadd.f32 0.0, %v887
    %v889 = vpop.f32.mrb[0].mxu0
    %890 = vmatprep.mubr.f32.mxu0 0.0
    %891 = vmatmul.mubr.f32.gmra.mrb[0].mxu0 %v35
    %v892 = vpop.f32.mrb[0].mxu0
    %v893 = vadd.f32 0.0, %v892
    %v894 = vpop.f32.mrb[0].mxu0
    %895 = vdwg.mxu0
    %896 = vmatprep.subr.mxu0 0.0
    %897 = vmatpush1.msra.mxu0 %v667
    %898 = vmatprep.subr.mxu0 0.0
    %899 = vmatpush1.msra.mxu0 %v668
    %900 = vmatprep.subr.mxu0 0.0
    %901 = vmatpush1.msra.mxu0 %v669
    %902 = vmatprep.subr.mxu0 0.0
    %903 = vmatpush1.msra.mxu0 %v670
    %904 = vmatprep.subr.mxu0 0.0
    %905 = vmatpush1.msra.mxu0 0.0
    %906 = vmatprep.subr.mxu0 0.0
    %907 = vmatpush1.msra.mxu0 0.0
    %908 = vmatprep.subr.mxu0 0.0
    %909 = vmatpush1.msra.mxu0 0.0
    %910 = vmatprep.subr.mxu0 0.0
    %911 = vmatpush1.msra.mxu0 0.0
    %912 = vmatprep.subr.mxu0 0.0
    %913 = vmatpush1.msra.mxu0 0.0
    %914 = vmatprep.subr.mxu0 0.0
    %915 = vmatpush1.msra.mxu0 0.0
    %916 = vmatprep.subr.mxu0 0.0
    %917 = vmatpush1.msra.mxu0 0.0
    %918 = vmatprep.subr.mxu0 0.0
    %919 = vmatpush1.msra.mxu0 0.0
    %920 = vmatprep.subr.mxu0 0.0
    %921 = vmatpush1.msra.mxu0 0.0
    %922 = vmatprep.subr.mxu0 0.0
    %923 = vmatpush1.msra.mxu0 0.0
    %924 = vmatprep.subr.mxu0 0.0
    %925 = vmatpush1.msra.mxu0 0.0
    %926 = vmatprep.subr.mxu0 0.0
    %927 = vmatpush1.msra.mxu0 0.0
    %928 = vmatprep.subr.mxu0 0.0
    %929 = vmatpush1.msra.mxu0 0.0
    %930 = vmatprep.subr.mxu0 0.0
    %931 = vmatpush1.msra.mxu0 0.0
    %932 = vmatprep.subr.mxu0 0.0
    %933 = vmatpush1.msra.mxu0 0.0
    %934 = vmatprep.subr.mxu0 0.0
    %935 = vmatpush1.msra.mxu0 0.0
    %936 = vmatprep.subr.mxu0 0.0
    %937 = vmatpush1.msra.mxu0 0.0
    %938 = vmatprep.subr.mxu0 0.0
    %939 = vmatpush1.msra.mxu0 0.0
    %940 = vmatprep.subr.mxu0 0.0
    %941 = vmatpush1.msra.mxu0 0.0
    %942 = vmatprep.subr.mxu0 0.0
    %943 = vmatpush1.msra.mxu0 0.0
    %944 = vmatprep.subr.mxu0 0.0
    %945 = vmatpush1.msra.mxu0 0.0
    %946 = vmatprep.subr.mxu0 0.0
    %947 = vmatpush1.msra.mxu0 0.0
    %948 = vmatprep.subr.mxu0 0.0
    %949 = vmatpush1.msra.mxu0 0.0
    %950 = vmatprep.subr.mxu0 0.0
    %951 = vmatpush1.msra.mxu0 0.0
    %952 = vmatprep.subr.mxu0 0.0
    %953 = vmatpush1.msra.mxu0 0.0
    %954 = vmatprep.subr.mxu0 0.0
    %955 = vmatpush1.msra.mxu0 0.0
    %956 = vmatprep.subr.mxu0 0.0
    %957 = vmatpush1.msra.mxu0 0.0
    %958 = vmatprep.subr.mxu0 0.0
    %959 = vmatpush1.msra.mxu0 0.0
    %960 = vmatprep.mubr.f32.mxu0 0.0
    %961 = vmatmul.mubr.f32.gmra.mrb[0].mxu0 %v32
    %v962 = vpop.f32.mrb[0].mxu0
    %v963 = vadd.f32 0.0, %v962
    %v964 = vpop.f32.mrb[0].mxu0
    %965 = vmatprep.mubr.f32.mxu0 0.0
    %966 = vmatmul.mubr.f32.gmra.mrb[0].mxu0 %v35
    %v967 = vpop.f32.mrb[0].mxu0
    %v968 = vadd.f32 0.0, %v967
    %v969 = vpop.f32.mrb[0].mxu0
    %970 = vdwg.mxu0
    %vm971 = vcmask 64512
    %v973 = vsel %vm971, %v104, 0
    %v976 = vsel %vm971, %v421, 0
    %978 = vmatprep.subr.mxu0 0.0
    %979 = vmatpush1.xpose.msra.mxu0 %v976
    %980 = vmatprep.subr.mxu0 0.0
    %981 = vmatpush1.xpose.msra.mxu0 0.0
    %982 = vmatprep.subr.mxu0 0.0
    %983 = vmatpush1.xpose.msra.mxu0 0.0
    %984 = vmatprep.subr.mxu0 0.0
    %985 = vmatpush1.xpose.msra.mxu0 0.0
    %986 = vmatprep.subr.mxu0 0.0
    %987 = vmatpush1.xpose.msra.mxu0 0.0
    %988 = vmatprep.subr.mxu0 0.0
    %989 = vmatpush1.xpose.msra.mxu0 0.0
    %990 = vmatprep.subr.mxu0 0.0
    %991 = vmatpush1.xpose.msra.mxu0 0.0
    %992 = vmatprep.subr.mxu0 0.0
    %993 = vmatpush1.xpose.msra.mxu0 0.0
    %994 = vmatprep.subr.mxu0 0.0
    %995 = vmatpush1.xpose.msra.mxu0 0.0
    %996 = vmatprep.subr.mxu0 0.0
    %997 = vmatpush1.xpose.msra.mxu0 0.0
    %998 = vmatprep.subr.mxu0 0.0
    %999 = vmatpush1.xpose.msra.mxu0 0.0
    %1000 = vmatprep.subr.mxu0 0.0
    %1001 = vmatpush1.xpose.msra.mxu0 0.0
    %1002 = vmatprep.subr.mxu0 0.0
    %1003 = vmatpush1.xpose.msra.mxu0 0.0
    %1004 = vmatprep.subr.mxu0 0.0
    %1005 = vmatpush1.xpose.msra.mxu0 0.0
    %1006 = vmatprep.subr.mxu0 0.0
    %1007 = vmatpush1.xpose.msra.mxu0 0.0
    %1008 = vmatprep.subr.mxu0 0.0
    %1009 = vmatpush1.xpose.msra.mxu0 0.0
    %1010 = vmatprep.subr.mxu0 0.0
    %1011 = vmatpush1.xpose.msra.mxu0 0.0
    %1012 = vmatprep.subr.mxu0 0.0
    %1013 = vmatpush1.xpose.msra.mxu0 0.0
    %1014 = vmatprep.subr.mxu0 0.0
    %1015 = vmatpush1.xpose.msra.mxu0 0.0
    %1016 = vmatprep.subr.mxu0 0.0
    %1017 = vmatpush1.xpose.msra.mxu0 0.0
    %1018 = vmatprep.subr.mxu0 0.0
    %1019 = vmatpush1.xpose.msra.mxu0 0.0
    %1020 = vmatprep.subr.mxu0 0.0
    %1021 = vmatpush1.xpose.msra.mxu0 0.0
    %1022 = vmatprep.subr.mxu0 0.0
    %1023 = vmatpush1.xpose.msra.mxu0 0.0
    %1024 = vmatprep.subr.mxu0 0.0
    %1025 = vmatpush1.xpose.msra.mxu0 0.0
    %1026 = vmatprep.subr.mxu0 0.0
    %1027 = vmatpush1.xpose.msra.mxu0 0.0
    %1028 = vmatprep.subr.mxu0 0.0
    %1029 = vmatpush1.xpose.msra.mxu0 0.0
    %1030 = vmatprep.subr.mxu0 0.0
    %1031 = vmatpush1.xpose.msra.mxu0 0.0
    %1032 = vmatprep.subr.mxu0 0.0
    %1033 = vmatpush1.xpose.msra.mxu0 0.0
    %1034 = vmatprep.subr.mxu0 0.0
    %1035 = vmatpush1.xpose.msra.mxu0 0.0
    %1036 = vmatprep.subr.mxu0 0.0
    %1037 = vmatpush1.xpose.msra.mxu0 0.0
    %1038 = vmatprep.subr.mxu0 0.0
    %1039 = vmatpush1.xpose.msra.mxu0 0.0
    %1040 = vmatprep.subr.mxu0 0.0
    %1041 = vmatpush1.xpose.msra.mxu0 0.0
    %1042 = vmatprep.mubr.f32.mxu0 0.0
    %1043 = vmatmul.mubr.f32.gmra.mrb[0].mxu0 %v973
    %v1044 = vpop.f32.mrb[0].mxu0
    %v1045 = vadd.f32 0.0, %v1044
    %v1046 = vpop.f32.mrb[0].mxu0
    %1047 = vdwg.mxu0
    %v1049 = vsel %vm971, %v109, 0
    %v1052 = vsel %vm971, %v426, 0
    %1054 = vmatprep.subr.mxu0 0.0
    %1055 = vmatpush1.xpose.msra.mxu0 %v1052
    %1056 = vmatprep.subr.mxu0 0.0
    %1057 = vmatpush1.xpose.msra.mxu0 0.0
    %1058 = vmatprep.subr.mxu0 0.0
    %1059 = vmatpush1.xpose.msra.mxu0 0.0
    %1060 = vmatprep.subr.mxu0 0.0
    %1061 = vmatpush1.xpose.msra.mxu0 0.0
    %1062 = vmatprep.subr.mxu0 0.0
    %1063 = vmatpush1.xpose.msra.mxu0 0.0
    %1064 = vmatprep.subr.mxu0 0.0
    %1065 = vmatpush1.xpose.msra.mxu0 0.0
    %1066 = vmatprep.subr.mxu0 0.0
    %1067 = vmatpush1.xpose.msra.mxu0 0.0
    %1068 = vmatprep.subr.mxu0 0.0
    %1069 = vmatpush1.xpose.msra.mxu0 0.0
    %1070 = vmatprep.subr.mxu0 0.0
    %1071 = vmatpush1.xpose.msra.mxu0 0.0
    %1072 = vmatprep.subr.mxu0 0.0
    %1073 = vmatpush1.xpose.msra.mxu0 0.0
    %1074 = vmatprep.subr.mxu0 0.0
    %1075 = vmatpush1.xpose.msra.mxu0 0.0
    %1076 = vmatprep.subr.mxu0 0.0
    %1077 = vmatpush1.xpose.msra.mxu0 0.0
    %1078 = vmatprep.subr.mxu0 0.0
    %1079 = vmatpush1.xpose.msra.mxu0 0.0
    %1080 = vmatprep.subr.mxu0 0.0
    %1081 = vmatpush1.xpose.msra.mxu0 0.0
    %1082 = vmatprep.subr.mxu0 0.0
    %1083 = vmatpush1.xpose.msra.mxu0 0.0
    %1084 = vmatprep.subr.mxu0 0.0
    %1085 = vmatpush1.xpose.msra.mxu0 0.0
    %1086 = vmatprep.subr.mxu0 0.0
    %1087 = vmatpush1.xpose.msra.mxu0 0.0
    %1088 = vmatprep.subr.mxu0 0.0
    %1089 = vmatpush1.xpose.msra.mxu0 0.0
    %1090 = vmatprep.subr.mxu0 0.0
    %1091 = vmatpush1.xpose.msra.mxu0 0.0
    %1092 = vmatprep.subr.mxu0 0.0
    %1093 = vmatpush1.xpose.msra.mxu0 0.0
    %1094 = vmatprep.subr.mxu0 0.0
    %1095 = vmatpush1.xpose.msra.mxu0 0.0
    %1096 = vmatprep.subr.mxu0 0.0
    %1097 = vmatpush1.xpose.msra.mxu0 0.0
    %1098 = vmatprep.subr.mxu0 0.0
    %1099 = vmatpush1.xpose.msra.mxu0 0.0
    %1100 = vmatprep.subr.mxu0 0.0
    %1101 = vmatpush1.xpose.msra.mxu0 0.0
    %1102 = vmatprep.subr.mxu0 0.0
    %1103 = vmatpush1.xpose.msra.mxu0 0.0
    %1104 = vmatprep.subr.mxu0 0.0
    %1105 = vmatpush1.xpose.msra.mxu0 0.0
    %1106 = vmatprep.subr.mxu0 0.0
    %1107 = vmatpush1.xpose.msra.mxu0 0.0
    %1108 = vmatprep.subr.mxu0 0.0
    %1109 = vmatpush1.xpose.msra.mxu0 0.0
    %1110 = vmatprep.subr.mxu0 0.0
    %1111 = vmatpush1.xpose.msra.mxu0 0.0
    %1112 = vmatprep.subr.mxu0 0.0
    %1113 = vmatpush1.xpose.msra.mxu0 0.0
    %1114 = vmatprep.subr.mxu0 0.0
    %1115 = vmatpush1.xpose.msra.mxu0 0.0
    %1116 = vmatprep.subr.mxu0 0.0
    %1117 = vmatpush1.xpose.msra.mxu0 0.0
    %1118 = vmatprep.mubr.f32.mxu0 0.0
    %1119 = vmatmul.mubr.f32.gmra.mrb[0].mxu0 %v1049
    %v1120 = vpop.f32.mrb[0].mxu0
    %v1121 = vadd.f32 0.0, %v1120
    %v1122 = vpop.f32.mrb[0].mxu0
    %1123 = vdwg.mxu0
    %v1125 = vsel %vm971, %v179, 0
    %v1128 = vsel %vm971, %v496, 0
    %1130 = vmatprep.subr.mxu0 0.0
    %1131 = vmatpush1.xpose.msra.mxu0 %v1128
    %1132 = vmatprep.subr.mxu0 0.0
    %1133 = vmatpush1.xpose.msra.mxu0 0.0
    %1134 = vmatprep.subr.mxu0 0.0
    %1135 = vmatpush1.xpose.msra.mxu0 0.0
    %1136 = vmatprep.subr.mxu0 0.0
    %1137 = vmatpush1.xpose.msra.mxu0 0.0
    %1138 = vmatprep.subr.mxu0 0.0
    %1139 = vmatpush1.xpose.msra.mxu0 0.0
    %1140 = vmatprep.subr.mxu0 0.0
    %1141 = vmatpush1.xpose.msra.mxu0 0.0
    %1142 = vmatprep.subr.mxu0 0.0
    %1143 = vmatpush1.xpose.msra.mxu0 0.0
    %1144 = vmatprep.subr.mxu0 0.0
    %1145 = vmatpush1.xpose.msra.mxu0 0.0
    %1146 = vmatprep.subr.mxu0 0.0
    %1147 = vmatpush1.xpose.msra.mxu0 0.0
    %1148 = vmatprep.subr.mxu0 0.0
    %1149 = vmatpush1.xpose.msra.mxu0 0.0
    %1150 = vmatprep.subr.mxu0 0.0
    %1151 = vmatpush1.xpose.msra.mxu0 0.0
    %1152 = vmatprep.subr.mxu0 0.0
    %1153 = vmatpush1.xpose.msra.mxu0 0.0
    %1154 = vmatprep.subr.mxu0 0.0
    %1155 = vmatpush1.xpose.msra.mxu0 0.0
    %1156 = vmatprep.subr.mxu0 0.0
    %1157 = vmatpush1.xpose.msra.mxu0 0.0
    %1158 = vmatprep.subr.mxu0 0.0
    %1159 = vmatpush1.xpose.msra.mxu0 0.0
    %1160 = vmatprep.subr.mxu0 0.0
    %1161 = vmatpush1.xpose.msra.mxu0 0.0
    %1162 = vmatprep.subr.mxu0 0.0
    %1163 = vmatpush1.xpose.msra.mxu0 0.0
    %1164 = vmatprep.subr.mxu0 0.0
    %1165 = vmatpush1.xpose.msra.mxu0 0.0
    %1166 = vmatprep.subr.mxu0 0.0
    %1167 = vmatpush1.xpose.msra.mxu0 0.0
    %1168 = vmatprep.subr.mxu0 0.0
    %1169 = vmatpush1.xpose.msra.mxu0 0.0
    %1170 = vmatprep.subr.mxu0 0.0
    %1171 = vmatpush1.xpose.msra.mxu0 0.0
    %1172 = vmatprep.subr.mxu0 0.0
    %1173 = vmatpush1.xpose.msra.mxu0 0.0
    %1174 = vmatprep.subr.mxu0 0.0
    %1175 = vmatpush1.xpose.msra.mxu0 0.0
    %1176 = vmatprep.subr.mxu0 0.0
    %1177 = vmatpush1.xpose.msra.mxu0 0.0
    %1178 = vmatprep.subr.mxu0 0.0
    %1179 = vmatpush1.xpose.msra.mxu0 0.0
    %1180 = vmatprep.subr.mxu0 0.0
    %1181 = vmatpush1.xpose.msra.mxu0 0.0
    %1182 = vmatprep.subr.mxu0 0.0
    %1183 = vmatpush1.xpose.msra.mxu0 0.0
    %1184 = vmatprep.subr.mxu0 0.0
    %1185 = vmatpush1.xpose.msra.mxu0 0.0
    %1186 = vmatprep.subr.mxu0 0.0
    %1187 = vmatpush1.xpose.msra.mxu0 0.0
    %1188 = vmatprep.subr.mxu0 0.0
    %1189 = vmatpush1.xpose.msra.mxu0 0.0
    %1190 = vmatprep.subr.mxu0 0.0
    %1191 = vmatpush1.xpose.msra.mxu0 0.0
    %1192 = vmatprep.subr.mxu0 0.0
    %1193 = vmatpush1.xpose.msra.mxu0 0.0
    %1194 = vmatprep.mubr.f32.mxu0 0.0
    %1195 = vmatmul.mubr.f32.gmra.mrb[0].mxu0 %v1125
    %v1196 = vpop.f32.mrb[0].mxu0
    %v1197 = vadd.f32 0.0, %v1196
    %v1198 = vpop.f32.mrb[0].mxu0
    %1199 = vdwg.mxu0
    %v1201 = vsel %vm971, %v184, 0
    %v1204 = vsel %vm971, %v501, 0
    %1206 = vmatprep.subr.mxu0 0.0
    %1207 = vmatpush1.xpose.msra.mxu0 %v1204
    %1208 = vmatprep.subr.mxu0 0.0
    %1209 = vmatpush1.xpose.msra.mxu0 0.0
    %1210 = vmatprep.subr.mxu0 0.0
    %1211 = vmatpush1.xpose.msra.mxu0 0.0
    %1212 = vmatprep.subr.mxu0 0.0
    %1213 = vmatpush1.xpose.msra.mxu0 0.0
    %1214 = vmatprep.subr.mxu0 0.0
    %1215 = vmatpush1.xpose.msra.mxu0 0.0
    %1216 = vmatprep.subr.mxu0 0.0
    %1217 = vmatpush1.xpose.msra.mxu0 0.0
    %1218 = vmatprep.subr.mxu0 0.0
    %1219 = vmatpush1.xpose.msra.mxu0 0.0
    %1220 = vmatprep.subr.mxu0 0.0
    %1221 = vmatpush1.xpose.msra.mxu0 0.0
    %1222 = vmatprep.subr.mxu0 0.0
    %1223 = vmatpush1.xpose.msra.mxu0 0.0
    %1224 = vmatprep.subr.mxu0 0.0
    %1225 = vmatpush1.xpose.msra.mxu0 0.0
    %1226 = vmatprep.subr.mxu0 0.0
    %1227 = vmatpush1.xpose.msra.mxu0 0.0
    %1228 = vmatprep.subr.mxu0 0.0
    %1229 = vmatpush1.xpose.msra.mxu0 0.0
    %1230 = vmatprep.subr.mxu0 0.0
    %1231 = vmatpush1.xpose.msra.mxu0 0.0
    %1232 = vmatprep.subr.mxu0 0.0
    %1233 = vmatpush1.xpose.msra.mxu0 0.0
    %1234 = vmatprep.subr.mxu0 0.0
    %1235 = vmatpush1.xpose.msra.mxu0 0.0
    %1236 = vmatprep.subr.mxu0 0.0
    %1237 = vmatpush1.xpose.msra.mxu0 0.0
    %1238 = vmatprep.subr.mxu0 0.0
    %1239 = vmatpush1.xpose.msra.mxu0 0.0
    %1240 = vmatprep.subr.mxu0 0.0
    %1241 = vmatpush1.xpose.msra.mxu0 0.0
    %1242 = vmatprep.subr.mxu0 0.0
    %1243 = vmatpush1.xpose.msra.mxu0 0.0
    %1244 = vmatprep.subr.mxu0 0.0
    %1245 = vmatpush1.xpose.msra.mxu0 0.0
    %1246 = vmatprep.subr.mxu0 0.0
    %1247 = vmatpush1.xpose.msra.mxu0 0.0
    %1248 = vmatprep.subr.mxu0 0.0
    %1249 = vmatpush1.xpose.msra.mxu0 0.0
    %1250 = vmatprep.subr.mxu0 0.0
    %1251 = vmatpush1.xpose.msra.mxu0 0.0
    %1252 = vmatprep.subr.mxu0 0.0
    %1253 = vmatpush1.xpose.msra.mxu0 0.0
    %1254 = vmatprep.subr.mxu0 0.0
    %1255 = vmatpush1.xpose.msra.mxu0 0.0
    %1256 = vmatprep.subr.mxu0 0.0
    %1257 = vmatpush1.xpose.msra.mxu0 0.0
    %1258 = vmatprep.subr.mxu0 0.0
    %1259 = vmatpush1.xpose.msra.mxu0 0.0
    %1260 = vmatprep.subr.mxu0 0.0
    %1261 = vmatpush1.xpose.msra.mxu0 0.0
    %1262 = vmatprep.subr.mxu0 0.0
    %1263 = vmatpush1.xpose.msra.mxu0 0.0
    %1264 = vmatprep.subr.mxu0 0.0
    %1265 = vmatpush1.xpose.msra.mxu0 0.0
    %1266 = vmatprep.subr.mxu0 0.0
    %1267 = vmatpush1.xpose.msra.mxu0 0.0
    %1268 = vmatprep.subr.mxu0 0.0
    %1269 = vmatpush1.xpose.msra.mxu0 0.0
    %1270 = vmatprep.mubr.f32.mxu0 0.0
    %1271 = vmatmul.mubr.f32.gmra.mrb[0].mxu0 %v1201
    %v1272 = vpop.f32.mrb[0].mxu0
    %v1273 = vadd.f32 0.0, %v1272
    %v1274 = vpop.f32.mrb[0].mxu0
    %1275 = vdwg.mxu0
    %v1277 = vsel %vm971, %v254, 0
    %v1280 = vsel %vm971, %v571, 0
    %1282 = vmatprep.subr.mxu0 0.0
    %1283 = vmatpush1.xpose.msra.mxu0 %v1280
    %1284 = vmatprep.subr.mxu0 0.0
    %1285 = vmatpush1.xpose.msra.mxu0 0.0
    %1286 = vmatprep.subr.mxu0 0.0
    %1287 = vmatpush1.xpose.msra.mxu0 0.0
    %1288 = vmatprep.subr.mxu0 0.0
    %1289 = vmatpush1.xpose.msra.mxu0 0.0
    %1290 = vmatprep.subr.mxu0 0.0
    %1291 = vmatpush1.xpose.msra.mxu0 0.0
    %1292 = vmatprep.subr.mxu0 0.0
    %1293 = vmatpush1.xpose.msra.mxu0 0.0
    %1294 = vmatprep.subr.mxu0 0.0
    %1295 = vmatpush1.xpose.msra.mxu0 0.0
    %1296 = vmatprep.subr.mxu0 0.0
    %1297 = vmatpush1.xpose.msra.mxu0 0.0
    %1298 = vmatprep.subr.mxu0 0.0
    %1299 = vmatpush1.xpose.msra.mxu0 0.0
    %1300 = vmatprep.subr.mxu0 0.0
    %1301 = vmatpush1.xpose.msra.mxu0 0.0
    %1302 = vmatprep.subr.mxu0 0.0
    %1303 = vmatpush1.xpose.msra.mxu0 0.0
    %1304 = vmatprep.subr.mxu0 0.0
    %1305 = vmatpush1.xpose.msra.mxu0 0.0
    %1306 = vmatprep.subr.mxu0 0.0
    %1307 = vmatpush1.xpose.msra.mxu0 0.0
    %1308 = vmatprep.subr.mxu0 0.0
    %1309 = vmatpush1.xpose.msra.mxu0 0.0
    %1310 = vmatprep.subr.mxu0 0.0
    %1311 = vmatpush1.xpose.msra.mxu0 0.0
    %1312 = vmatprep.subr.mxu0 0.0
    %1313 = vmatpush1.xpose.msra.mxu0 0.0
    %1314 = vmatprep.subr.mxu0 0.0
    %1315 = vmatpush1.xpose.msra.mxu0 0.0
    %1316 = vmatprep.subr.mxu0 0.0
    %1317 = vmatpush1.xpose.msra.mxu0 0.0
    %1318 = vmatprep.subr.mxu0 0.0
    %1319 = vmatpush1.xpose.msra.mxu0 0.0
    %1320 = vmatprep.subr.mxu0 0.0
    %1321 = vmatpush1.xpose.msra.mxu0 0.0
    %1322 = vmatprep.subr.mxu0 0.0
    %1323 = vmatpush1.xpose.msra.mxu0 0.0
    %1324 = vmatprep.subr.mxu0 0.0
    %1325 = vmatpush1.xpose.msra.mxu0 0.0
    %1326 = vmatprep.subr.mxu0 0.0
    %1327 = vmatpush1.xpose.msra.mxu0 0.0
    %1328 = vmatprep.subr.mxu0 0.0
    %1329 = vmatpush1.xpose.msra.mxu0 0.0
    %1330 = vmatprep.subr.mxu0 0.0
    %1331 = vmatpush1.xpose.msra.mxu0 0.0
    %1332 = vmatprep.subr.mxu0 0.0
    %1333 = vmatpush1.xpose.msra.mxu0 0.0
    %1334 = vmatprep.subr.mxu0 0.0
    %1335 = vmatpush1.xpose.msra.mxu0 0.0
    %1336 = vmatprep.subr.mxu0 0.0
    %1337 = vmatpush1.xpose.msra.mxu0 0.0
    %1338 = vmatprep.subr.mxu0 0.0
    %1339 = vmatpush1.xpose.msra.mxu0 0.0
    %1340 = vmatprep.subr.mxu0 0.0
    %1341 = vmatpush1.xpose.msra.mxu0 0.0
    %1342 = vmatprep.subr.mxu0 0.0
    %1343 = vmatpush1.xpose.msra.mxu0 0.0
    %1344 = vmatprep.subr.mxu0 0.0
    %1345 = vmatpush1.xpose.msra.mxu0 0.0
    %1346 = vmatprep.mubr.f32.mxu0 0.0
    %1347 = vmatmul.mubr.f32.gmra.mrb[0].mxu0 %v1277
    %v1348 = vpop.f32.mrb[0].mxu0
    %v1349 = vadd.f32 0.0, %v1348
    %v1350 = vpop.f32.mrb[0].mxu0
    %1351 = vdwg.mxu0
    %v1353 = vsel %vm971, %v259, 0
    %v1356 = vsel %vm971, %v576, 0
    %1358 = vmatprep.subr.mxu0 0.0
    %1359 = vmatpush1.xpose.msra.mxu0 %v1356
    %1360 = vmatprep.subr.mxu0 0.0
    %1361 = vmatpush1.xpose.msra.mxu0 0.0
    %1362 = vmatprep.subr.mxu0 0.0
    %1363 = vmatpush1.xpose.msra.mxu0 0.0
    %1364 = vmatprep.subr.mxu0 0.0
    %1365 = vmatpush1.xpose.msra.mxu0 0.0
    %1366 = vmatprep.subr.mxu0 0.0
    %1367 = vmatpush1.xpose.msra.mxu0 0.0
    %1368 = vmatprep.subr.mxu0 0.0
    %1369 = vmatpush1.xpose.msra.mxu0 0.0
    %1370 = vmatprep.subr.mxu0 0.0
    %1371 = vmatpush1.xpose.msra.mxu0 0.0
    %1372 = vmatprep.subr.mxu0 0.0
    %1373 = vmatpush1.xpose.msra.mxu0 0.0
    %1374 = vmatprep.subr.mxu0 0.0
    %1375 = vmatpush1.xpose.msra.mxu0 0.0
    %1376 = vmatprep.subr.mxu0 0.0
    %1377 = vmatpush1.xpose.msra.mxu0 0.0
    %1378 = vmatprep.subr.mxu0 0.0
    %1379 = vmatpush1.xpose.msra.mxu0 0.0
    %1380 = vmatprep.subr.mxu0 0.0
    %1381 = vmatpush1.xpose.msra.mxu0 0.0
    %1382 = vmatprep.subr.mxu0 0.0
    %1383 = vmatpush1.xpose.msra.mxu0 0.0
    %1384 = vmatprep.subr.mxu0 0.0
    %1385 = vmatpush1.xpose.msra.mxu0 0.0
    %1386 = vmatprep.subr.mxu0 0.0
    %1387 = vmatpush1.xpose.msra.mxu0 0.0
    %1388 = vmatprep.subr.mxu0 0.0
    %1389 = vmatpush1.xpose.msra.mxu0 0.0
    %1390 = vmatprep.subr.mxu0 0.0
    %1391 = vmatpush1.xpose.msra.mxu0 0.0
    %1392 = vmatprep.subr.mxu0 0.0
    %1393 = vmatpush1.xpose.msra.mxu0 0.0
    %1394 = vmatprep.subr.mxu0 0.0
    %1395 = vmatpush1.xpose.msra.mxu0 0.0
    %1396 = vmatprep.subr.mxu0 0.0
    %1397 = vmatpush1.xpose.msra.mxu0 0.0
    %1398 = vmatprep.subr.mxu0 0.0
    %1399 = vmatpush1.xpose.msra.mxu0 0.0
    %1400 = vmatprep.subr.mxu0 0.0
    %1401 = vmatpush1.xpose.msra.mxu0 0.0
    %1402 = vmatprep.subr.mxu0 0.0
    %1403 = vmatpush1.xpose.msra.mxu0 0.0
    %1404 = vmatprep.subr.mxu0 0.0
    %1405 = vmatpush1.xpose.msra.mxu0 0.0
    %1406 = vmatprep.subr.mxu0 0.0
    %1407 = vmatpush1.xpose.msra.mxu0 0.0
    %1408 = vmatprep.subr.mxu0 0.0
    %1409 = vmatpush1.xpose.msra.mxu0 0.0
    %1410 = vmatprep.subr.mxu0 0.0
    %1411 = vmatpush1.xpose.msra.mxu0 0.0
    %1412 = vmatprep.subr.mxu0 0.0
    %1413 = vmatpush1.xpose.msra.mxu0 0.0
    %1414 = vmatprep.subr.mxu0 0.0
    %1415 = vmatpush1.xpose.msra.mxu0 0.0
    %1416 = vmatprep.subr.mxu0 0.0
    %1417 = vmatpush1.xpose.msra.mxu0 0.0
    %1418 = vmatprep.subr.mxu0 0.0
    %1419 = vmatpush1.xpose.msra.mxu0 0.0
    %1420 = vmatprep.subr.mxu0 0.0
    %1421 = vmatpush1.xpose.msra.mxu0 0.0
    %1422 = vmatprep.mubr.f32.mxu0 0.0
    %1423 = vmatmul.mubr.f32.gmra.mrb[0].mxu0 %v1353
    %v1424 = vpop.f32.mrb[0].mxu0
    %v1425 = vadd.f32 0.0, %v1424
    %v1426 = vpop.f32.mrb[0].mxu0
    %1427 = vdwg.mxu0
    %v1429 = vsel %vm971, %v329, 0
    %v1432 = vsel %vm971, %v646, 0
    %1434 = vmatprep.subr.mxu0 0.0
    %1435 = vmatpush1.xpose.msra.mxu0 %v1432
    %1436 = vmatprep.subr.mxu0 0.0
    %1437 = vmatpush1.xpose.msra.mxu0 0.0
    %1438 = vmatprep.subr.mxu0 0.0
    %1439 = vmatpush1.xpose.msra.mxu0 0.0
    %1440 = vmatprep.subr.mxu0 0.0
    %1441 = vmatpush1.xpose.msra.mxu0 0.0
    %1442 = vmatprep.subr.mxu0 0.0
    %1443 = vmatpush1.xpose.msra.mxu0 0.0
    %1444 = vmatprep.subr.mxu0 0.0
    %1445 = vmatpush1.xpose.msra.mxu0 0.0
    %1446 = vmatprep.subr.mxu0 0.0
    %1447 = vmatpush1.xpose.msra.mxu0 0.0
    %1448 = vmatprep.subr.mxu0 0.0
    %1449 = vmatpush1.xpose.msra.mxu0 0.0
    %1450 = vmatprep.subr.mxu0 0.0
    %1451 = vmatpush1.xpose.msra.mxu0 0.0
    %1452 = vmatprep.subr.mxu0 0.0
    %1453 = vmatpush1.xpose.msra.mxu0 0.0
    %1454 = vmatprep.subr.mxu0 0.0
    %1455 = vmatpush1.xpose.msra.mxu0 0.0
    %1456 = vmatprep.subr.mxu0 0.0
    %1457 = vmatpush1.xpose.msra.mxu0 0.0
    %1458 = vmatprep.subr.mxu0 0.0
    %1459 = vmatpush1.xpose.msra.mxu0 0.0
    %1460 = vmatprep.subr.mxu0 0.0
    %1461 = vmatpush1.xpose.msra.mxu0 0.0
    %1462 = vmatprep.subr.mxu0 0.0
    %1463 = vmatpush1.xpose.msra.mxu0 0.0
    %1464 = vmatprep.subr.mxu0 0.0
    %1465 = vmatpush1.xpose.msra.mxu0 0.0
    %1466 = vmatprep.subr.mxu0 0.0
    %1467 = vmatpush1.xpose.msra.mxu0 0.0
    %1468 = vmatprep.subr.mxu0 0.0
    %1469 = vmatpush1.xpose.msra.mxu0 0.0
    %1470 = vmatprep.subr.mxu0 0.0
    %1471 = vmatpush1.xpose.msra.mxu0 0.0
    %1472 = vmatprep.subr.mxu0 0.0
    %1473 = vmatpush1.xpose.msra.mxu0 0.0
    %1474 = vmatprep.subr.mxu0 0.0
    %1475 = vmatpush1.xpose.msra.mxu0 0.0
    %1476 = vmatprep.subr.mxu0 0.0
    %1477 = vmatpush1.xpose.msra.mxu0 0.0
    %1478 = vmatprep.subr.mxu0 0.0
    %1479 = vmatpush1.xpose.msra.mxu0 0.0
    %1480 = vmatprep.subr.mxu0 0.0
    %1481 = vmatpush1.xpose.msra.mxu0 0.0
    %1482 = vmatprep.subr.mxu0 0.0
    %1483 = vmatpush1.xpose.msra.mxu0 0.0
    %1484 = vmatprep.subr.mxu0 0.0
    %1485 = vmatpush1.xpose.msra.mxu0 0.0
    %1486 = vmatprep.subr.mxu0 0.0
    %1487 = vmatpush1.xpose.msra.mxu0 0.0
    %1488 = vmatprep.subr.mxu0 0.0
    %1489 = vmatpush1.xpose.msra.mxu0 0.0
    %1490 = vmatprep.subr.mxu0 0.0
    %1491 = vmatpush1.xpose.msra.mxu0 0.0
    %1492 = vmatprep.subr.mxu0 0.0
    %1493 = vmatpush1.xpose.msra.mxu0 0.0
    %1494 = vmatprep.subr.mxu0 0.0
    %1495 = vmatpush1.xpose.msra.mxu0 0.0
    %1496 = vmatprep.subr.mxu0 0.0
    %1497 = vmatpush1.xpose.msra.mxu0 0.0
    %1498 = vmatprep.mubr.f32.mxu0 0.0
    %1499 = vmatmul.mubr.f32.gmra.mrb[0].mxu0 %v1429
    %v1500 = vpop.f32.mrb[0].mxu0
    %v1501 = vadd.f32 0.0, %v1500
    %v1502 = vpop.f32.mrb[0].mxu0
    %1503 = vdwg.mxu0
    %v1505 = vsel %vm971, %v334, 0
    %v1508 = vsel %vm971, %v651, 0
    %1510 = vmatprep.subr.mxu0 0.0
    %1511 = vmatpush1.xpose.msra.mxu0 %v1508
    %1512 = vmatprep.subr.mxu0 0.0
    %1513 = vmatpush1.xpose.msra.mxu0 0.0
    %1514 = vmatprep.subr.mxu0 0.0
    %1515 = vmatpush1.xpose.msra.mxu0 0.0
    %1516 = vmatprep.subr.mxu0 0.0
    %1517 = vmatpush1.xpose.msra.mxu0 0.0
    %1518 = vmatprep.subr.mxu0 0.0
    %1519 = vmatpush1.xpose.msra.mxu0 0.0
    %1520 = vmatprep.subr.mxu0 0.0
    %1521 = vmatpush1.xpose.msra.mxu0 0.0
    %1522 = vmatprep.subr.mxu0 0.0
    %1523 = vmatpush1.xpose.msra.mxu0 0.0
    %1524 = vmatprep.subr.mxu0 0.0
    %1525 = vmatpush1.xpose.msra.mxu0 0.0
    %1526 = vmatprep.subr.mxu0 0.0
    %1527 = vmatpush1.xpose.msra.mxu0 0.0
    %1528 = vmatprep.subr.mxu0 0.0
    %1529 = vmatpush1.xpose.msra.mxu0 0.0
    %1530 = vmatprep.subr.mxu0 0.0
    %1531 = vmatpush1.xpose.msra.mxu0 0.0
    %1532 = vmatprep.subr.mxu0 0.0
    %1533 = vmatpush1.xpose.msra.mxu0 0.0
    %1534 = vmatprep.subr.mxu0 0.0
    %1535 = vmatpush1.xpose.msra.mxu0 0.0
    %1536 = vmatprep.subr.mxu0 0.0
    %1537 = vmatpush1.xpose.msra.mxu0 0.0
    %1538 = vmatprep.subr.mxu0 0.0
    %1539 = vmatpush1.xpose.msra.mxu0 0.0
    %1540 = vmatprep.subr.mxu0 0.0
    %1541 = vmatpush1.xpose.msra.mxu0 0.0
    %1542 = vmatprep.subr.mxu0 0.0
    %1543 = vmatpush1.xpose.msra.mxu0 0.0
    %1544 = vmatprep.subr.mxu0 0.0
    %1545 = vmatpush1.xpose.msra.mxu0 0.0
    %1546 = vmatprep.subr.mxu0 0.0
    %1547 = vmatpush1.xpose.msra.mxu0 0.0
    %1548 = vmatprep.subr.mxu0 0.0
    %1549 = vmatpush1.xpose.msra.mxu0 0.0
    %1550 = vmatprep.subr.mxu0 0.0
    %1551 = vmatpush1.xpose.msra.mxu0 0.0
    %1552 = vmatprep.subr.mxu0 0.0
    %1553 = vmatpush1.xpose.msra.mxu0 0.0
    %1554 = vmatprep.subr.mxu0 0.0
    %1555 = vmatpush1.xpose.msra.mxu0 0.0
    %1556 = vmatprep.subr.mxu0 0.0
    %1557 = vmatpush1.xpose.msra.mxu0 0.0
    %1558 = vmatprep.subr.mxu0 0.0
    %1559 = vmatpush1.xpose.msra.mxu0 0.0
    %1560 = vmatprep.subr.mxu0 0.0
    %1561 = vmatpush1.xpose.msra.mxu0 0.0
    %1562 = vmatprep.subr.mxu0 0.0
    %1563 = vmatpush1.xpose.msra.mxu0 0.0
    %1564 = vmatprep.subr.mxu0 0.0
    %1565 = vmatpush1.xpose.msra.mxu0 0.0
    %1566 = vmatprep.subr.mxu0 0.0
    %1567 = vmatpush1.xpose.msra.mxu0 0.0
    %1568 = vmatprep.subr.mxu0 0.0
    %1569 = vmatpush1.xpose.msra.mxu0 0.0
    %1570 = vmatprep.subr.mxu0 0.0
    %1571 = vmatpush1.xpose.msra.mxu0 0.0
    %1572 = vmatprep.subr.mxu0 0.0
    %1573 = vmatpush1.xpose.msra.mxu0 0.0
    %1574 = vmatprep.mubr.f32.mxu0 0.0
    %1575 = vmatmul.mubr.f32.gmra.mrb[0].mxu0 %v1505
    %v1576 = vpop.f32.mrb[0].mxu0
    %v1577 = vadd.f32 0.0, %v1576
    %v1578 = vpop.f32.mrb[0].mxu0
    %1579 = vdwg.mxu0
    %v1580 = vmul.f32 %v1045, 0.17677669
    %v1581 = vmul.f32 %v1121, 0.17677669
    %v1582 = vmul.f32 %v1197, 0.17677669
    %v1583 = vmul.f32 %v1273, 0.17677669
    %v1584 = vmul.f32 %v1349, 0.17677669
    %v1585 = vmul.f32 %v1425, 0.17677669
    %v1586 = vmul.f32 %v1501, 0.17677669
    %v1587 = vmul.f32 %v1577, 0.17677669
    %v1588 = vlaneseq
    %v1589 = vshrl.u32 %v1588, 7
    %v1590 = vlaneseq
    %v1591 = vand.u32 %v1590, 127
    %vm1592 = vcmp.le.s32.totalorder %v1591, %v1589
    %v1593 = vsel %vm1592, 1, 0
    %vm1594 = vcmp.eq.s32.totalorder %v1593, 1
    %v1595 = vsel %vm1594, %v1580, -inf
    %v1596 = vsel %vm1594, %v1581, -inf
    %v1597 = vsel %vm1594, %v1582, -inf
    %v1598 = vsel %vm1594, %v1583, -inf
    %v1599 = vsel %vm1594, %v1584, -inf
    %v1600 = vsel %vm1594, %v1585, -inf
    %v1601 = vsel %vm1594, %v1586, -inf
    %v1602 = vsel %vm1594, %v1587, -inf
    %v1603 = vsel %vm971, %v1595, -inf
    %1604 = vmax.xlane.f32.xlu0 %v1603
    %v1605 = vpop.xlane.xlu0 %1604
    %v1606 = vsel %vm971, %v1596, -inf
    %1607 = vmax.xlane.f32.xlu0 %v1606
    %v1608 = vpop.xlane.xlu0 %1607
    %v1609 = vsel %vm971, %v1597, -inf
    %1610 = vmax.xlane.f32.xlu0 %v1609
    %v1611 = vpop.xlane.xlu0 %1610
    %v1612 = vsel %vm971, %v1598, -inf
    %1613 = vmax.xlane.f32.xlu0 %v1612
    %v1614 = vpop.xlane.xlu0 %1613
    %v1615 = vsel %vm971, %v1599, -inf
    %1616 = vmax.xlane.f32.xlu0 %v1615
    %v1617 = vpop.xlane.xlu0 %1616
    %v1618 = vsel %vm971, %v1600, -inf
    %1619 = vmax.xlane.f32.xlu0 %v1618
    %v1620 = vpop.xlane.xlu0 %1619
    %v1621 = vsel %vm971, %v1601, -inf
    %1622 = vmax.xlane.f32.xlu0 %v1621
    %v1623 = vpop.xlane.xlu0 %1622
    %v1624 = vsel %vm971, %v1602, -inf
    %1625 = vmax.xlane.f32.xlu0 %v1624
    %v1626 = vpop.xlane.xlu0 %1625
    %v1627 = vsub.f32 %v1595, %v1605
    %v1628 = vsub.f32 %v1596, %v1608
    %v1629 = vsub.f32 %v1597, %v1611
    %v1630 = vsub.f32 %v1598, %v1614
    %v1631 = vsub.f32 %v1599, %v1617
    %v1632 = vsub.f32 %v1600, %v1620
    %v1633 = vsub.f32 %v1601, %v1623
    %v1634 = vsub.f32 %v1602, %v1626
    %v1635 = vmul.f32 %v1627, 1.442695
    %v1636 = vpow.pop %v1635
    %v1637 = vmul.f32 %v1628, 1.442695
    %v1638 = vpow.pop %v1637
    %v1639 = vmul.f32 %v1629, 1.442695
    %v1640 = vpow.pop %v1639
    %v1641 = vmul.f32 %v1630, 1.442695
    %v1642 = vpow.pop %v1641
    %v1643 = vmul.f32 %v1631, 1.442695
    %v1644 = vpow.pop %v1643
    %v1645 = vmul.f32 %v1632, 1.442695
    %v1646 = vpow.pop %v1645
    %v1647 = vmul.f32 %v1633, 1.442695
    %v1648 = vpow.pop %v1647
    %v1649 = vmul.f32 %v1634, 1.442695
    %v1650 = vpow.pop %v1649
    %v1651 = vsel %vm971, %v1636, 0.0
    %1652 = vadd.xlane.f32.xlu0 %v1651
    %v1653 = vpop.xlane.xlu0 %1652
    %v1654 = vsel %vm971, %v1638, 0.0
    %1655 = vadd.xlane.f32.xlu0 %v1654
    %v1656 = vpop.xlane.xlu0 %1655
    %v1657 = vsel %vm971, %v1640, 0.0
    %1658 = vadd.xlane.f32.xlu0 %v1657
    %v1659 = vpop.xlane.xlu0 %1658
    %v1660 = vsel %vm971, %v1642, 0.0
    %1661 = vadd.xlane.f32.xlu0 %v1660
    %v1662 = vpop.xlane.xlu0 %1661
    %v1663 = vsel %vm971, %v1644, 0.0
    %1664 = vadd.xlane.f32.xlu0 %v1663
    %v1665 = vpop.xlane.xlu0 %1664
    %v1666 = vsel %vm971, %v1646, 0.0
    %1667 = vadd.xlane.f32.xlu0 %v1666
    %v1668 = vpop.xlane.xlu0 %1667
    %v1669 = vsel %vm971, %v1648, 0.0
    %1670 = vadd.xlane.f32.xlu0 %v1669
    %v1671 = vpop.xlane.xlu0 %1670
    %v1672 = vsel %vm971, %v1650, 0.0
    %1673 = vadd.xlane.f32.xlu0 %v1672
    %v1674 = vpop.xlane.xlu0 %1673
    %v1675 = vrcp.pop %v1653
    %v1676 = vrcp.pop %v1656
    %v1677 = vrcp.pop %v1659
    %v1678 = vrcp.pop %v1662
    %v1679 = vrcp.pop %v1665
    %v1680 = vrcp.pop %v1668
    %v1681 = vrcp.pop %v1671
    %v1682 = vrcp.pop %v1674
    %v1683 = vmul.f32 %v1636, %v1675
    %v1684 = vmul.f32 %v1638, %v1676
    %v1685 = vmul.f32 %v1640, %v1677
    %v1686 = vmul.f32 %v1642, %v1678
    %v1687 = vmul.f32 %v1644, %v1679
    %v1688 = vmul.f32 %v1646, %v1680
    %v1689 = vmul.f32 %v1648, %v1681
    %v1690 = vmul.f32 %v1650, %v1682
    %v1692 = vsel %vm971, %v1683, 0
    %1694 = vmatprep.subr.mxu0 0.0
    %1695 = vmatpush1.msra.mxu0 %v738
    %1696 = vmatprep.subr.mxu0 0.0
    %1697 = vmatpush1.msra.mxu0 0.0
    %1698 = vmatprep.subr.mxu0 0.0
    %1699 = vmatpush1.msra.mxu0 0.0
    %1700 = vmatprep.subr.mxu0 0.0
    %1701 = vmatpush1.msra.mxu0 0.0
    %1702 = vmatprep.subr.mxu0 0.0
    %1703 = vmatpush1.msra.mxu0 0.0
    %1704 = vmatprep.subr.mxu0 0.0
    %1705 = vmatpush1.msra.mxu0 0.0
    %1706 = vmatprep.subr.mxu0 0.0
    %1707 = vmatpush1.msra.mxu0 0.0
    %1708 = vmatprep.subr.mxu0 0.0
    %1709 = vmatpush1.msra.mxu0 0.0
    %1710 = vmatprep.subr.mxu0 0.0
    %1711 = vmatpush1.msra.mxu0 0.0
    %1712 = vmatprep.subr.mxu0 0.0
    %1713 = vmatpush1.msra.mxu0 0.0
    %1714 = vmatprep.subr.mxu0 0.0
    %1715 = vmatpush1.msra.mxu0 0.0
    %1716 = vmatprep.subr.mxu0 0.0
    %1717 = vmatpush1.msra.mxu0 0.0
    %1718 = vmatprep.subr.mxu0 0.0
    %1719 = vmatpush1.msra.mxu0 0.0
    %1720 = vmatprep.subr.mxu0 0.0
    %1721 = vmatpush1.msra.mxu0 0.0
    %1722 = vmatprep.subr.mxu0 0.0
    %1723 = vmatpush1.msra.mxu0 0.0
    %1724 = vmatprep.subr.mxu0 0.0
    %1725 = vmatpush1.msra.mxu0 0.0
    %1726 = vmatprep.subr.mxu0 0.0
    %1727 = vmatpush1.msra.mxu0 0.0
    %1728 = vmatprep.subr.mxu0 0.0
    %1729 = vmatpush1.msra.mxu0 0.0
    %1730 = vmatprep.subr.mxu0 0.0
    %1731 = vmatpush1.msra.mxu0 0.0
    %1732 = vmatprep.subr.mxu0 0.0
    %1733 = vmatpush1.msra.mxu0 0.0
    %1734 = vmatprep.subr.mxu0 0.0
    %1735 = vmatpush1.msra.mxu0 0.0
    %1736 = vmatprep.subr.mxu0 0.0
    %1737 = vmatpush1.msra.mxu0 0.0
    %1738 = vmatprep.subr.mxu0 0.0
    %1739 = vmatpush1.msra.mxu0 0.0
    %1740 = vmatprep.subr.mxu0 0.0
    %1741 = vmatpush1.msra.mxu0 0.0
    %1742 = vmatprep.subr.mxu0 0.0
    %1743 = vmatpush1.msra.mxu0 0.0
    %1744 = vmatprep.subr.mxu0 0.0
    %1745 = vmatpush1.msra.mxu0 0.0
    %1746 = vmatprep.subr.mxu0 0.0
    %1747 = vmatpush1.msra.mxu0 0.0
    %1748 = vmatprep.subr.mxu0 0.0
    %1749 = vmatpush1.msra.mxu0 0.0
    %1750 = vmatprep.subr.mxu0 0.0
    %1751 = vmatpush1.msra.mxu0 0.0
    %1752 = vmatprep.subr.mxu0 0.0
    %1753 = vmatpush1.msra.mxu0 0.0
    %1754 = vmatprep.subr.mxu0 0.0
    %1755 = vmatpush1.msra.mxu0 0.0
    %1756 = vmatprep.subr.mxu0 0.0
    %1757 = vmatpush1.msra.mxu0 0.0
    %1758 = vmatprep.mubr.f32.mxu0 0.0
    %1759 = vmatmul.mubr.f32.gmra.mrb[0].mxu0 %v1692
    %v1760 = vpop.f32.mrb[0].mxu0
    %v1761 = vadd.f32 0.0, %v1760
    %v1762 = vpop.f32.mrb[0].mxu0
    %1763 = vdwg.mxu0
    %v1765 = vsel %vm971, %v1684, 0
    %1767 = vmatprep.subr.mxu0 0.0
    %1768 = vmatpush1.msra.mxu0 %v743
    %1769 = vmatprep.subr.mxu0 0.0
    %1770 = vmatpush1.msra.mxu0 0.0
    %1771 = vmatprep.subr.mxu0 0.0
    %1772 = vmatpush1.msra.mxu0 0.0
    %1773 = vmatprep.subr.mxu0 0.0
    %1774 = vmatpush1.msra.mxu0 0.0
    %1775 = vmatprep.subr.mxu0 0.0
    %1776 = vmatpush1.msra.mxu0 0.0
    %1777 = vmatprep.subr.mxu0 0.0
    %1778 = vmatpush1.msra.mxu0 0.0
    %1779 = vmatprep.subr.mxu0 0.0
    %1780 = vmatpush1.msra.mxu0 0.0
    %1781 = vmatprep.subr.mxu0 0.0
    %1782 = vmatpush1.msra.mxu0 0.0
    %1783 = vmatprep.subr.mxu0 0.0
    %1784 = vmatpush1.msra.mxu0 0.0
    %1785 = vmatprep.subr.mxu0 0.0
    %1786 = vmatpush1.msra.mxu0 0.0
    %1787 = vmatprep.subr.mxu0 0.0
    %1788 = vmatpush1.msra.mxu0 0.0
    %1789 = vmatprep.subr.mxu0 0.0
    %1790 = vmatpush1.msra.mxu0 0.0
    %1791 = vmatprep.subr.mxu0 0.0
    %1792 = vmatpush1.msra.mxu0 0.0
    %1793 = vmatprep.subr.mxu0 0.0
    %1794 = vmatpush1.msra.mxu0 0.0
    %1795 = vmatprep.subr.mxu0 0.0
    %1796 = vmatpush1.msra.mxu0 0.0
    %1797 = vmatprep.subr.mxu0 0.0
    %1798 = vmatpush1.msra.mxu0 0.0
    %1799 = vmatprep.subr.mxu0 0.0
    %1800 = vmatpush1.msra.mxu0 0.0
    %1801 = vmatprep.subr.mxu0 0.0
    %1802 = vmatpush1.msra.mxu0 0.0
    %1803 = vmatprep.subr.mxu0 0.0
    %1804 = vmatpush1.msra.mxu0 0.0
    %1805 = vmatprep.subr.mxu0 0.0
    %1806 = vmatpush1.msra.mxu0 0.0
    %1807 = vmatprep.subr.mxu0 0.0
    %1808 = vmatpush1.msra.mxu0 0.0
    %1809 = vmatprep.subr.mxu0 0.0
    %1810 = vmatpush1.msra.mxu0 0.0
    %1811 = vmatprep.subr.mxu0 0.0
    %1812 = vmatpush1.msra.mxu0 0.0
    %1813 = vmatprep.subr.mxu0 0.0
    %1814 = vmatpush1.msra.mxu0 0.0
    %1815 = vmatprep.subr.mxu0 0.0
    %1816 = vmatpush1.msra.mxu0 0.0
    %1817 = vmatprep.subr.mxu0 0.0
    %1818 = vmatpush1.msra.mxu0 0.0
    %1819 = vmatprep.subr.mxu0 0.0
    %1820 = vmatpush1.msra.mxu0 0.0
    %1821 = vmatprep.subr.mxu0 0.0
    %1822 = vmatpush1.msra.mxu0 0.0
    %1823 = vmatprep.subr.mxu0 0.0
    %1824 = vmatpush1.msra.mxu0 0.0
    %1825 = vmatprep.subr.mxu0 0.0
    %1826 = vmatpush1.msra.mxu0 0.0
    %1827 = vmatprep.subr.mxu0 0.0
    %1828 = vmatpush1.msra.mxu0 0.0
    %1829 = vmatprep.subr.mxu0 0.0
    %1830 = vmatpush1.msra.mxu0 0.0
    %1831 = vmatprep.mubr.f32.mxu0 0.0
    %1832 = vmatmul.mubr.f32.gmra.mrb[0].mxu0 %v1765
    %v1833 = vpop.f32.mrb[0].mxu0
    %v1834 = vadd.f32 0.0, %v1833
    %v1835 = vpop.f32.mrb[0].mxu0
    %1836 = vdwg.mxu0
    %v1838 = vsel %vm971, %v1685, 0
    %1840 = vmatprep.subr.mxu0 0.0
    %1841 = vmatpush1.msra.mxu0 %v813
    %1842 = vmatprep.subr.mxu0 0.0
    %1843 = vmatpush1.msra.mxu0 0.0
    %1844 = vmatprep.subr.mxu0 0.0
    %1845 = vmatpush1.msra.mxu0 0.0
    %1846 = vmatprep.subr.mxu0 0.0
    %1847 = vmatpush1.msra.mxu0 0.0
    %1848 = vmatprep.subr.mxu0 0.0
    %1849 = vmatpush1.msra.mxu0 0.0
    %1850 = vmatprep.subr.mxu0 0.0
    %1851 = vmatpush1.msra.mxu0 0.0
    %1852 = vmatprep.subr.mxu0 0.0
    %1853 = vmatpush1.msra.mxu0 0.0
    %1854 = vmatprep.subr.mxu0 0.0
    %1855 = vmatpush1.msra.mxu0 0.0
    %1856 = vmatprep.subr.mxu0 0.0
    %1857 = vmatpush1.msra.mxu0 0.0
    %1858 = vmatprep.subr.mxu0 0.0
    %1859 = vmatpush1.msra.mxu0 0.0
    %1860 = vmatprep.subr.mxu0 0.0
    %1861 = vmatpush1.msra.mxu0 0.0
    %1862 = vmatprep.subr.mxu0 0.0
    %1863 = vmatpush1.msra.mxu0 0.0
    %1864 = vmatprep.subr.mxu0 0.0
    %1865 = vmatpush1.msra.mxu0 0.0
    %1866 = vmatprep.subr.mxu0 0.0
    %1867 = vmatpush1.msra.mxu0 0.0
    %1868 = vmatprep.subr.mxu0 0.0
    %1869 = vmatpush1.msra.mxu0 0.0
    %1870 = vmatprep.subr.mxu0 0.0
    %1871 = vmatpush1.msra.mxu0 0.0
    %1872 = vmatprep.subr.mxu0 0.0
    %1873 = vmatpush1.msra.mxu0 0.0
    %1874 = vmatprep.subr.mxu0 0.0
    %1875 = vmatpush1.msra.mxu0 0.0
    %1876 = vmatprep.subr.mxu0 0.0
    %1877 = vmatpush1.msra.mxu0 0.0
    %1878 = vmatprep.subr.mxu0 0.0
    %1879 = vmatpush1.msra.mxu0 0.0
    %1880 = vmatprep.subr.mxu0 0.0
    %1881 = vmatpush1.msra.mxu0 0.0
    %1882 = vmatprep.subr.mxu0 0.0
    %1883 = vmatpush1.msra.mxu0 0.0
    %1884 = vmatprep.subr.mxu0 0.0
    %1885 = vmatpush1.msra.mxu0 0.0
    %1886 = vmatprep.subr.mxu0 0.0
    %1887 = vmatpush1.msra.mxu0 0.0
    %1888 = vmatprep.subr.mxu0 0.0
    %1889 = vmatpush1.msra.mxu0 0.0
    %1890 = vmatprep.subr.mxu0 0.0
    %1891 = vmatpush1.msra.mxu0 0.0
    %1892 = vmatprep.subr.mxu0 0.0
    %1893 = vmatpush1.msra.mxu0 0.0
    %1894 = vmatprep.subr.mxu0 0.0
    %1895 = vmatpush1.msra.mxu0 0.0
    %1896 = vmatprep.subr.mxu0 0.0
    %1897 = vmatpush1.msra.mxu0 0.0
    %1898 = vmatprep.subr.mxu0 0.0
    %1899 = vmatpush1.msra.mxu0 0.0
    %1900 = vmatprep.subr.mxu0 0.0
    %1901 = vmatpush1.msra.mxu0 0.0
    %1902 = vmatprep.subr.mxu0 0.0
    %1903 = vmatpush1.msra.mxu0 0.0
    %1904 = vmatprep.mubr.f32.mxu0 0.0
    %1905 = vmatmul.mubr.f32.gmra.mrb[0].mxu0 %v1838
    %v1906 = vpop.f32.mrb[0].mxu0
    %v1907 = vadd.f32 0.0, %v1906
    %v1908 = vpop.f32.mrb[0].mxu0
    %1909 = vdwg.mxu0
    %v1911 = vsel %vm971, %v1686, 0
    %1913 = vmatprep.subr.mxu0 0.0
    %1914 = vmatpush1.msra.mxu0 %v818
    %1915 = vmatprep.subr.mxu0 0.0
    %1916 = vmatpush1.msra.mxu0 0.0
    %1917 = vmatprep.subr.mxu0 0.0
    %1918 = vmatpush1.msra.mxu0 0.0
    %1919 = vmatprep.subr.mxu0 0.0
    %1920 = vmatpush1.msra.mxu0 0.0
    %1921 = vmatprep.subr.mxu0 0.0
    %1922 = vmatpush1.msra.mxu0 0.0
    %1923 = vmatprep.subr.mxu0 0.0
    %1924 = vmatpush1.msra.mxu0 0.0
    %1925 = vmatprep.subr.mxu0 0.0
    %1926 = vmatpush1.msra.mxu0 0.0
    %1927 = vmatprep.subr.mxu0 0.0
    %1928 = vmatpush1.msra.mxu0 0.0
    %1929 = vmatprep.subr.mxu0 0.0
    %1930 = vmatpush1.msra.mxu0 0.0
    %1931 = vmatprep.subr.mxu0 0.0
    %1932 = vmatpush1.msra.mxu0 0.0
    %1933 = vmatprep.subr.mxu0 0.0
    %1934 = vmatpush1.msra.mxu0 0.0
    %1935 = vmatprep.subr.mxu0 0.0
    %1936 = vmatpush1.msra.mxu0 0.0
    %1937 = vmatprep.subr.mxu0 0.0
    %1938 = vmatpush1.msra.mxu0 0.0
    %1939 = vmatprep.subr.mxu0 0.0
    %1940 = vmatpush1.msra.mxu0 0.0
    %1941 = vmatprep.subr.mxu0 0.0
    %1942 = vmatpush1.msra.mxu0 0.0
    %1943 = vmatprep.subr.mxu0 0.0
    %1944 = vmatpush1.msra.mxu0 0.0
    %1945 = vmatprep.subr.mxu0 0.0
    %1946 = vmatpush1.msra.mxu0 0.0
    %1947 = vmatprep.subr.mxu0 0.0
    %1948 = vmatpush1.msra.mxu0 0.0
    %1949 = vmatprep.subr.mxu0 0.0
    %1950 = vmatpush1.msra.mxu0 0.0
    %1951 = vmatprep.subr.mxu0 0.0
    %1952 = vmatpush1.msra.mxu0 0.0
    %1953 = vmatprep.subr.mxu0 0.0
    %1954 = vmatpush1.msra.mxu0 0.0
    %1955 = vmatprep.subr.mxu0 0.0
    %1956 = vmatpush1.msra.mxu0 0.0
    %1957 = vmatprep.subr.mxu0 0.0
    %1958 = vmatpush1.msra.mxu0 0.0
    %1959 = vmatprep.subr.mxu0 0.0
    %1960 = vmatpush1.msra.mxu0 0.0
    %1961 = vmatprep.subr.mxu0 0.0
    %1962 = vmatpush1.msra.mxu0 0.0
    %1963 = vmatprep.subr.mxu0 0.0
    %1964 = vmatpush1.msra.mxu0 0.0
    %1965 = vmatprep.subr.mxu0 0.0
    %1966 = vmatpush1.msra.mxu0 0.0
    %1967 = vmatprep.subr.mxu0 0.0
    %1968 = vmatpush1.msra.mxu0 0.0
    %1969 = vmatprep.subr.mxu0 0.0
    %1970 = vmatpush1.msra.mxu0 0.0
    %1971 = vmatprep.subr.mxu0 0.0
    %1972 = vmatpush1.msra.mxu0 0.0
    %1973 = vmatprep.subr.mxu0 0.0
    %1974 = vmatpush1.msra.mxu0 0.0
    %1975 = vmatprep.subr.mxu0 0.0
    %1976 = vmatpush1.msra.mxu0 0.0
    %1977 = vmatprep.mubr.f32.mxu0 0.0
    %1978 = vmatmul.mubr.f32.gmra.mrb[0].mxu0 %v1911
    %v1979 = vpop.f32.mrb[0].mxu0
    %v1980 = vadd.f32 0.0, %v1979
    %v1981 = vpop.f32.mrb[0].mxu0
    %1982 = vdwg.mxu0
    %v1984 = vsel %vm971, %v1687, 0
    %1986 = vmatprep.subr.mxu0 0.0
    %1987 = vmatpush1.msra.mxu0 %v888
    %1988 = vmatprep.subr.mxu0 0.0
    %1989 = vmatpush1.msra.mxu0 0.0
    %1990 = vmatprep.subr.mxu0 0.0
    %1991 = vmatpush1.msra.mxu0 0.0
    %1992 = vmatprep.subr.mxu0 0.0
    %1993 = vmatpush1.msra.mxu0 0.0
    %1994 = vmatprep.subr.mxu0 0.0
    %1995 = vmatpush1.msra.mxu0 0.0
    %1996 = vmatprep.subr.mxu0 0.0
    %1997 = vmatpush1.msra.mxu0 0.0
    %1998 = vmatprep.subr.mxu0 0.0
    %1999 = vmatpush1.msra.mxu0 0.0
    %2000 = vmatprep.subr.mxu0 0.0
    %2001 = vmatpush1.msra.mxu0 0.0
    %2002 = vmatprep.subr.mxu0 0.0
    %2003 = vmatpush1.msra.mxu0 0.0
    %2004 = vmatprep.subr.mxu0 0.0
    %2005 = vmatpush1.msra.mxu0 0.0
    %2006 = vmatprep.subr.mxu0 0.0
    %2007 = vmatpush1.msra.mxu0 0.0
    %2008 = vmatprep.subr.mxu0 0.0
    %2009 = vmatpush1.msra.mxu0 0.0
    %2010 = vmatprep.subr.mxu0 0.0
    %2011 = vmatpush1.msra.mxu0 0.0
    %2012 = vmatprep.subr.mxu0 0.0
    %2013 = vmatpush1.msra.mxu0 0.0
    %2014 = vmatprep.subr.mxu0 0.0
    %2015 = vmatpush1.msra.mxu0 0.0
    %2016 = vmatprep.subr.mxu0 0.0
    %2017 = vmatpush1.msra.mxu0 0.0
    %2018 = vmatprep.subr.mxu0 0.0
    %2019 = vmatpush1.msra.mxu0 0.0
    %2020 = vmatprep.subr.mxu0 0.0
    %2021 = vmatpush1.msra.mxu0 0.0
    %2022 = vmatprep.subr.mxu0 0.0
    %2023 = vmatpush1.msra.mxu0 0.0
    %2024 = vmatprep.subr.mxu0 0.0
    %2025 = vmatpush1.msra.mxu0 0.0
    %2026 = vmatprep.subr.mxu0 0.0
    %2027 = vmatpush1.msra.mxu0 0.0
    %2028 = vmatprep.subr.mxu0 0.0
    %2029 = vmatpush1.msra.mxu0 0.0
    %2030 = vmatprep.subr.mxu0 0.0
    %2031 = vmatpush1.msra.mxu0 0.0
    %2032 = vmatprep.subr.mxu0 0.0
    %2033 = vmatpush1.msra.mxu0 0.0
    %2034 = vmatprep.subr.mxu0 0.0
    %2035 = vmatpush1.msra.mxu0 0.0
    %2036 = vmatprep.subr.mxu0 0.0
    %2037 = vmatpush1.msra.mxu0 0.0
    %2038 = vmatprep.subr.mxu0 0.0
    %2039 = vmatpush1.msra.mxu0 0.0
    %2040 = vmatprep.subr.mxu0 0.0
    %2041 = vmatpush1.msra.mxu0 0.0
    %2042 = vmatprep.subr.mxu0 0.0
    %2043 = vmatpush1.msra.mxu0 0.0
    %2044 = vmatprep.subr.mxu0 0.0
    %2045 = vmatpush1.msra.mxu0 0.0
    %2046 = vmatprep.subr.mxu0 0.0
    %2047 = vmatpush1.msra.mxu0 0.0
    %2048 = vmatprep.subr.mxu0 0.0
    %2049 = vmatpush1.msra.mxu0 0.0
    %2050 = vmatprep.mubr.f32.mxu0 0.0
    %2051 = vmatmul.mubr.f32.gmra.mrb[0].mxu0 %v1984
    %v2052 = vpop.f32.mrb[0].mxu0
    %v2053 = vadd.f32 0.0, %v2052
    %v2054 = vpop.f32.mrb[0].mxu0
    %2055 = vdwg.mxu0
    %v2057 = vsel %vm971, %v1688, 0
    %2059 = vmatprep.subr.mxu0 0.0
    %2060 = vmatpush1.msra.mxu0 %v893
    %2061 = vmatprep.subr.mxu0 0.0
    %2062 = vmatpush1.msra.mxu0 0.0
    %2063 = vmatprep.subr.mxu0 0.0
    %2064 = vmatpush1.msra.mxu0 0.0
    %2065 = vmatprep.subr.mxu0 0.0
    %2066 = vmatpush1.msra.mxu0 0.0
    %2067 = vmatprep.subr.mxu0 0.0
    %2068 = vmatpush1.msra.mxu0 0.0
    %2069 = vmatprep.subr.mxu0 0.0
    %2070 = vmatpush1.msra.mxu0 0.0
    %2071 = vmatprep.subr.mxu0 0.0
    %2072 = vmatpush1.msra.mxu0 0.0
    %2073 = vmatprep.subr.mxu0 0.0
    %2074 = vmatpush1.msra.mxu0 0.0
    %2075 = vmatprep.subr.mxu0 0.0
    %2076 = vmatpush1.msra.mxu0 0.0
    %2077 = vmatprep.subr.mxu0 0.0
    %2078 = vmatpush1.msra.mxu0 0.0
    %2079 = vmatprep.subr.mxu0 0.0
    %2080 = vmatpush1.msra.mxu0 0.0
    %2081 = vmatprep.subr.mxu0 0.0
    %2082 = vmatpush1.msra.mxu0 0.0
    %2083 = vmatprep.subr.mxu0 0.0
    %2084 = vmatpush1.msra.mxu0 0.0
    %2085 = vmatprep.subr.mxu0 0.0
    %2086 = vmatpush1.msra.mxu0 0.0
    %2087 = vmatprep.subr.mxu0 0.0
    %2088 = vmatpush1.msra.mxu0 0.0
    %2089 = vmatprep.subr.mxu0 0.0
    %2090 = vmatpush1.msra.mxu0 0.0
    %2091 = vmatprep.subr.mxu0 0.0
    %2092 = vmatpush1.msra.mxu0 0.0
    %2093 = vmatprep.subr.mxu0 0.0
    %2094 = vmatpush1.msra.mxu0 0.0
    %2095 = vmatprep.subr.mxu0 0.0
    %2096 = vmatpush1.msra.mxu0 0.0
    %2097 = vmatprep.subr.mxu0 0.0
    %2098 = vmatpush1.msra.mxu0 0.0
    %2099 = vmatprep.subr.mxu0 0.0
    %2100 = vmatpush1.msra.mxu0 0.0
    %2101 = vmatprep.subr.mxu0 0.0
    %2102 = vmatpush1.msra.mxu0 0.0
    %2103 = vmatprep.subr.mxu0 0.0
    %2104 = vmatpush1.msra.mxu0 0.0
    %2105 = vmatprep.subr.mxu0 0.0
    %2106 = vmatpush1.msra.mxu0 0.0
    %2107 = vmatprep.subr.mxu0 0.0
    %2108 = vmatpush1.msra.mxu0 0.0
    %2109 = vmatprep.subr.mxu0 0.0
    %2110 = vmatpush1.msra.mxu0 0.0
    %2111 = vmatprep.subr.mxu0 0.0
    %2112 = vmatpush1.msra.mxu0 0.0
    %2113 = vmatprep.subr.mxu0 0.0
    %2114 = vmatpush1.msra.mxu0 0.0
    %2115 = vmatprep.subr.mxu0 0.0
    %2116 = vmatpush1.msra.mxu0 0.0
    %2117 = vmatprep.subr.mxu0 0.0
    %2118 = vmatpush1.msra.mxu0 0.0
    %2119 = vmatprep.subr.mxu0 0.0
    %2120 = vmatpush1.msra.mxu0 0.0
    %2121 = vmatprep.subr.mxu0 0.0
    %2122 = vmatpush1.msra.mxu0 0.0
    %2123 = vmatprep.mubr.f32.mxu0 0.0
    %2124 = vmatmul.mubr.f32.gmra.mrb[0].mxu0 %v2057
    %v2125 = vpop.f32.mrb[0].mxu0
    %v2126 = vadd.f32 0.0, %v2125
    %v2127 = vpop.f32.mrb[0].mxu0
    %2128 = vdwg.mxu0
    %v2130 = vsel %vm971, %v1689, 0
    %2132 = vmatprep.subr.mxu0 0.0
    %2133 = vmatpush1.msra.mxu0 %v963
    %2134 = vmatprep.subr.mxu0 0.0
    %2135 = vmatpush1.msra.mxu0 0.0
    %2136 = vmatprep.subr.mxu0 0.0
    %2137 = vmatpush1.msra.mxu0 0.0
    %2138 = vmatprep.subr.mxu0 0.0
    %2139 = vmatpush1.msra.mxu0 0.0
    %2140 = vmatprep.subr.mxu0 0.0
    %2141 = vmatpush1.msra.mxu0 0.0
    %2142 = vmatprep.subr.mxu0 0.0
    %2143 = vmatpush1.msra.mxu0 0.0
    %2144 = vmatprep.subr.mxu0 0.0
    %2145 = vmatpush1.msra.mxu0 0.0
    %2146 = vmatprep.subr.mxu0 0.0
    %2147 = vmatpush1.msra.mxu0 0.0
    %2148 = vmatprep.subr.mxu0 0.0
    %2149 = vmatpush1.msra.mxu0 0.0
    %2150 = vmatprep.subr.mxu0 0.0
    %2151 = vmatpush1.msra.mxu0 0.0
    %2152 = vmatprep.subr.mxu0 0.0
    %2153 = vmatpush1.msra.mxu0 0.0
    %2154 = vmatprep.subr.mxu0 0.0
    %2155 = vmatpush1.msra.mxu0 0.0
    %2156 = vmatprep.subr.mxu0 0.0
    %2157 = vmatpush1.msra.mxu0 0.0
    %2158 = vmatprep.subr.mxu0 0.0
    %2159 = vmatpush1.msra.mxu0 0.0
    %2160 = vmatprep.subr.mxu0 0.0
    %2161 = vmatpush1.msra.mxu0 0.0
    %2162 = vmatprep.subr.mxu0 0.0
    %2163 = vmatpush1.msra.mxu0 0.0
    %2164 = vmatprep.subr.mxu0 0.0
    %2165 = vmatpush1.msra.mxu0 0.0
    %2166 = vmatprep.subr.mxu0 0.0
    %2167 = vmatpush1.msra.mxu0 0.0
    %2168 = vmatprep.subr.mxu0 0.0
    %2169 = vmatpush1.msra.mxu0 0.0
    %2170 = vmatprep.subr.mxu0 0.0
    %2171 = vmatpush1.msra.mxu0 0.0
    %2172 = vmatprep.subr.mxu0 0.0
    %2173 = vmatpush1.msra.mxu0 0.0
    %2174 = vmatprep.subr.mxu0 0.0
    %2175 = vmatpush1.msra.mxu0 0.0
    %2176 = vmatprep.subr.mxu0 0.0
    %2177 = vmatpush1.msra.mxu0 0.0
    %2178 = vmatprep.subr.mxu0 0.0
    %2179 = vmatpush1.msra.mxu0 0.0
    %2180 = vmatprep.subr.mxu0 0.0
    %2181 = vmatpush1.msra.mxu0 0.0
    %2182 = vmatprep.subr.mxu0 0.0
    %2183 = vmatpush1.msra.mxu0 0.0
    %2184 = vmatprep.subr.mxu0 0.0
    %2185 = vmatpush1.msra.mxu0 0.0
    %2186 = vmatprep.subr.mxu0 0.0
    %2187 = vmatpush1.msra.mxu0 0.0
    %2188 = vmatprep.subr.mxu0 0.0
    %2189 = vmatpush1.msra.mxu0 0.0
    %2190 = vmatprep.subr.mxu0 0.0
    %2191 = vmatpush1.msra.mxu0 0.0
    %2192 = vmatprep.subr.mxu0 0.0
    %2193 = vmatpush1.msra.mxu0 0.0
    %2194 = vmatprep.subr.mxu0 0.0
    %2195 = vmatpush1.msra.mxu0 0.0
    %2196 = vmatprep.mubr.f32.mxu0 0.0
    %2197 = vmatmul.mubr.f32.gmra.mrb[0].mxu0 %v2130
    %v2198 = vpop.f32.mrb[0].mxu0
    %v2199 = vadd.f32 0.0, %v2198
    %v2200 = vpop.f32.mrb[0].mxu0
    %2201 = vdwg.mxu0
    %v2203 = vsel %vm971, %v1690, 0
    %2205 = vmatprep.subr.mxu0 0.0
    %2206 = vmatpush1.msra.mxu0 %v968
    %2207 = vmatprep.subr.mxu0 0.0
    %2208 = vmatpush1.msra.mxu0 0.0
    %2209 = vmatprep.subr.mxu0 0.0
    %2210 = vmatpush1.msra.mxu0 0.0
    %2211 = vmatprep.subr.mxu0 0.0
    %2212 = vmatpush1.msra.mxu0 0.0
    %2213 = vmatprep.subr.mxu0 0.0
    %2214 = vmatpush1.msra.mxu0 0.0
    %2215 = vmatprep.subr.mxu0 0.0
    %2216 = vmatpush1.msra.mxu0 0.0
    %2217 = vmatprep.subr.mxu0 0.0
    %2218 = vmatpush1.msra.mxu0 0.0
    %2219 = vmatprep.subr.mxu0 0.0
    %2220 = vmatpush1.msra.mxu0 0.0
    %2221 = vmatprep.subr.mxu0 0.0
    %2222 = vmatpush1.msra.mxu0 0.0
    %2223 = vmatprep.subr.mxu0 0.0
    %2224 = vmatpush1.msra.mxu0 0.0
    %2225 = vmatprep.subr.mxu0 0.0
    %2226 = vmatpush1.msra.mxu0 0.0
    %2227 = vmatprep.subr.mxu0 0.0
    %2228 = vmatpush1.msra.mxu0 0.0
    %2229 = vmatprep.subr.mxu0 0.0
    %2230 = vmatpush1.msra.mxu0 0.0
    %2231 = vmatprep.subr.mxu0 0.0
    %2232 = vmatpush1.msra.mxu0 0.0
    %2233 = vmatprep.subr.mxu0 0.0
    %2234 = vmatpush1.msra.mxu0 0.0
    %2235 = vmatprep.subr.mxu0 0.0
    %2236 = vmatpush1.msra.mxu0 0.0
    %2237 = vmatprep.subr.mxu0 0.0
    %2238 = vmatpush1.msra.mxu0 0.0
    %2239 = vmatprep.subr.mxu0 0.0
    %2240 = vmatpush1.msra.mxu0 0.0
    %2241 = vmatprep.subr.mxu0 0.0
    %2242 = vmatpush1.msra.mxu0 0.0
    %2243 = vmatprep.subr.mxu0 0.0
    %2244 = vmatpush1.msra.mxu0 0.0
    %2245 = vmatprep.subr.mxu0 0.0
    %2246 = vmatpush1.msra.mxu0 0.0
    %2247 = vmatprep.subr.mxu0 0.0
    %2248 = vmatpush1.msra.mxu0 0.0
    %2249 = vmatprep.subr.mxu0 0.0
    %2250 = vmatpush1.msra.mxu0 0.0
    %2251 = vmatprep.subr.mxu0 0.0
    %2252 = vmatpush1.msra.mxu0 0.0
    %2253 = vmatprep.subr.mxu0 0.0
    %2254 = vmatpush1.msra.mxu0 0.0
    %2255 = vmatprep.subr.mxu0 0.0
    %2256 = vmatpush1.msra.mxu0 0.0
    %2257 = vmatprep.subr.mxu0 0.0
    %2258 = vmatpush1.msra.mxu0 0.0
    %2259 = vmatprep.subr.mxu0 0.0
    %2260 = vmatpush1.msra.mxu0 0.0
    %2261 = vmatprep.subr.mxu0 0.0
    %2262 = vmatpush1.msra.mxu0 0.0
    %2263 = vmatprep.subr.mxu0 0.0
    %2264 = vmatpush1.msra.mxu0 0.0
    %2265 = vmatprep.subr.mxu0 0.0
    %2266 = vmatpush1.msra.mxu0 0.0
    %2267 = vmatprep.subr.mxu0 0.0
    %2268 = vmatpush1.msra.mxu0 0.0
    %2269 = vmatprep.mubr.f32.mxu0 0.0
    %2270 = vmatmul.mubr.f32.gmra.mrb[0].mxu0 %v2203
    %v2271 = vpop.f32.mrb[0].mxu0
    %v2272 = vadd.f32 0.0, %v2271
    %v2273 = vpop.f32.mrb[0].mxu0
    %2274 = vdwg.mxu0
    %v2275 = vadd.s32 %v1589, 8
    %v2276 = vadd.s32 %v1589, 16
    %v2277 = vadd.s32 %v1589, 24
    %vm2278 = vcmp.eq.s32.totalorder %v1591, %v1589
    %vm2279 = vcmp.eq.s32.totalorder %v1591, %v2275
    %vm2280 = vcmp.eq.s32.totalorder %v1591, %v2276
    %vm2281 = vcmp.eq.s32.totalorder %v1591, %v2277
    %v2282 = vsel %vm2278, 1, 0
    %v2283 = vsel %vm2279, 1, 0
    %v2284 = vsel %vm2280, 1, 0
    %v2285 = vsel %vm2281, 1, 0
    %v2286 = vcvt.s32.f32 %v2282
    %v2287 = vcvt.s32.f32 %v2283
    %v2288 = vcvt.s32.f32 %v2284
    %v2289 = vcvt.s32.f32 %v2285
    %v2291 = vsel %vm971, %v1761, 0
    %v2294 = vsel %vm971, %v1834, 0
    %2296 = vmatprep.subr.mxu0 0.0
    %2297 = vmatpush1.msra.mxu0 %v2286
    %2298 = vmatprep.subr.mxu0 0.0
    %2299 = vmatpush1.msra.mxu0 0.0
    %2300 = vmatprep.subr.mxu0 0.0
    %2301 = vmatpush1.msra.mxu0 0.0
    %2302 = vmatprep.subr.mxu0 0.0
    %2303 = vmatpush1.msra.mxu0 0.0
    %2304 = vmatprep.subr.mxu0 0.0
    %2305 = vmatpush1.msra.mxu0 0.0
    %2306 = vmatprep.subr.mxu0 0.0
    %2307 = vmatpush1.msra.mxu0 0.0
    %2308 = vmatprep.subr.mxu0 0.0
    %2309 = vmatpush1.msra.mxu0 0.0
    %2310 = vmatprep.subr.mxu0 0.0
    %2311 = vmatpush1.msra.mxu0 0.0
    %2312 = vmatprep.subr.mxu0 0.0
    %2313 = vmatpush1.msra.mxu0 0.0
    %2314 = vmatprep.subr.mxu0 0.0
    %2315 = vmatpush1.msra.mxu0 0.0
    %2316 = vmatprep.subr.mxu0 0.0
    %2317 = vmatpush1.msra.mxu0 0.0
    %2318 = vmatprep.subr.mxu0 0.0
    %2319 = vmatpush1.msra.mxu0 0.0
    %2320 = vmatprep.subr.mxu0 0.0
    %2321 = vmatpush1.msra.mxu0 0.0
    %2322 = vmatprep.subr.mxu0 0.0
    %2323 = vmatpush1.msra.mxu0 0.0
    %2324 = vmatprep.subr.mxu0 0.0
    %2325 = vmatpush1.msra.mxu0 0.0
    %2326 = vmatprep.subr.mxu0 0.0
    %2327 = vmatpush1.msra.mxu0 0.0
    %2328 = vmatprep.subr.mxu0 0.0
    %2329 = vmatpush1.msra.mxu0 0.0
    %2330 = vmatprep.subr.mxu0 0.0
    %2331 = vmatpush1.msra.mxu0 0.0
    %2332 = vmatprep.subr.mxu0 0.0
    %2333 = vmatpush1.msra.mxu0 0.0
    %2334 = vmatprep.subr.mxu0 0.0
    %2335 = vmatpush1.msra.mxu0 0.0
    %2336 = vmatprep.subr.mxu0 0.0
    %2337 = vmatpush1.msra.mxu0 0.0
    %2338 = vmatprep.subr.mxu0 0.0
    %2339 = vmatpush1.msra.mxu0 0.0
    %2340 = vmatprep.subr.mxu0 0.0
    %2341 = vmatpush1.msra.mxu0 0.0
    %2342 = vmatprep.subr.mxu0 0.0
    %2343 = vmatpush1.msra.mxu0 0.0
    %2344 = vmatprep.subr.mxu0 0.0
    %2345 = vmatpush1.msra.mxu0 0.0
    %2346 = vmatprep.subr.mxu0 0.0
    %2347 = vmatpush1.msra.mxu0 0.0
    %2348 = vmatprep.subr.mxu0 0.0
    %2349 = vmatpush1.msra.mxu0 0.0
    %2350 = vmatprep.subr.mxu0 0.0
    %2351 = vmatpush1.msra.mxu0 0.0
    %2352 = vmatprep.subr.mxu0 0.0
    %2353 = vmatpush1.msra.mxu0 0.0
    %2354 = vmatprep.subr.mxu0 0.0
    %2355 = vmatpush1.msra.mxu0 0.0
    %2356 = vmatprep.subr.mxu0 0.0
    %2357 = vmatpush1.msra.mxu0 0.0
    %2358 = vmatprep.subr.mxu0 0.0
    %2359 = vmatpush1.msra.mxu0 0.0
    %2360 = vmatprep.mubr.f32.mxu0 0.0
    %2361 = vmatmul.mubr.f32.gmra.mrb[0].mxu0 %v2291
    %v2362 = vpop.f32.mrb[0].mxu0
    %v2363 = vadd.f32 0.0, %v2362
    %v2364 = vpop.f32.mrb[0].mxu0
    %2365 = vmatprep.mubr.f32.mxu0 0.0
    %2366 = vmatmul.mubr.f32.gmra.mrb[0].mxu0 %v2294
    %v2367 = vpop.f32.mrb[0].mxu0
    %v2368 = vadd.f32 0.0, %v2367
    %v2369 = vpop.f32.mrb[0].mxu0
    %2370 = vdwg.mxu0
    %v2372 = vsel %vm971, %v1907, 0
    %v2375 = vsel %vm971, %v1980, 0
    %2377 = vmatprep.subr.mxu0 0.0
    %2378 = vmatpush1.msra.mxu0 %v2287
    %2379 = vmatprep.subr.mxu0 0.0
    %2380 = vmatpush1.msra.mxu0 0.0
    %2381 = vmatprep.subr.mxu0 0.0
    %2382 = vmatpush1.msra.mxu0 0.0
    %2383 = vmatprep.subr.mxu0 0.0
    %2384 = vmatpush1.msra.mxu0 0.0
    %2385 = vmatprep.subr.mxu0 0.0
    %2386 = vmatpush1.msra.mxu0 0.0
    %2387 = vmatprep.subr.mxu0 0.0
    %2388 = vmatpush1.msra.mxu0 0.0
    %2389 = vmatprep.subr.mxu0 0.0
    %2390 = vmatpush1.msra.mxu0 0.0
    %2391 = vmatprep.subr.mxu0 0.0
    %2392 = vmatpush1.msra.mxu0 0.0
    %2393 = vmatprep.subr.mxu0 0.0
    %2394 = vmatpush1.msra.mxu0 0.0
    %2395 = vmatprep.subr.mxu0 0.0
    %2396 = vmatpush1.msra.mxu0 0.0
    %2397 = vmatprep.subr.mxu0 0.0
    %2398 = vmatpush1.msra.mxu0 0.0
    %2399 = vmatprep.subr.mxu0 0.0
    %2400 = vmatpush1.msra.mxu0 0.0
    %2401 = vmatprep.subr.mxu0 0.0
    %2402 = vmatpush1.msra.mxu0 0.0
    %2403 = vmatprep.subr.mxu0 0.0
    %2404 = vmatpush1.msra.mxu0 0.0
    %2405 = vmatprep.subr.mxu0 0.0
    %2406 = vmatpush1.msra.mxu0 0.0
    %2407 = vmatprep.subr.mxu0 0.0
    %2408 = vmatpush1.msra.mxu0 0.0
    %2409 = vmatprep.subr.mxu0 0.0
    %2410 = vmatpush1.msra.mxu0 0.0
    %2411 = vmatprep.subr.mxu0 0.0
    %2412 = vmatpush1.msra.mxu0 0.0
    %2413 = vmatprep.subr.mxu0 0.0
    %2414 = vmatpush1.msra.mxu0 0.0
    %2415 = vmatprep.subr.mxu0 0.0
    %2416 = vmatpush1.msra.mxu0 0.0
    %2417 = vmatprep.subr.mxu0 0.0
    %2418 = vmatpush1.msra.mxu0 0.0
    %2419 = vmatprep.subr.mxu0 0.0
    %2420 = vmatpush1.msra.mxu0 0.0
    %2421 = vmatprep.subr.mxu0 0.0
    %2422 = vmatpush1.msra.mxu0 0.0
    %2423 = vmatprep.subr.mxu0 0.0
    %2424 = vmatpush1.msra.mxu0 0.0
    %2425 = vmatprep.subr.mxu0 0.0
    %2426 = vmatpush1.msra.mxu0 0.0
    %2427 = vmatprep.subr.mxu0 0.0
    %2428 = vmatpush1.msra.mxu0 0.0
    %2429 = vmatprep.subr.mxu0 0.0
    %2430 = vmatpush1.msra.mxu0 0.0
    %2431 = vmatprep.subr.mxu0 0.0
    %2432 = vmatpush1.msra.mxu0 0.0
    %2433 = vmatprep.subr.mxu0 0.0
    %2434 = vmatpush1.msra.mxu0 0.0
    %2435 = vmatprep.subr.mxu0 0.0
    %2436 = vmatpush1.msra.mxu0 0.0
    %2437 = vmatprep.subr.mxu0 0.0
    %2438 = vmatpush1.msra.mxu0 0.0
    %2439 = vmatprep.subr.mxu0 0.0
    %2440 = vmatpush1.msra.mxu0 0.0
    %2441 = vmatprep.mubr.f32.mxu0 0.0
    %2442 = vmatmul.mubr.f32.gmra.mrb[0].mxu0 %v2372
    %v2443 = vpop.f32.mrb[0].mxu0
    %v2444 = vadd.f32 0.0, %v2443
    %v2445 = vpop.f32.mrb[0].mxu0
    %2446 = vmatprep.mubr.f32.mxu0 0.0
    %2447 = vmatmul.mubr.f32.gmra.mrb[0].mxu0 %v2375
    %v2448 = vpop.f32.mrb[0].mxu0
    %v2449 = vadd.f32 0.0, %v2448
    %v2450 = vpop.f32.mrb[0].mxu0
    %2451 = vdwg.mxu0
    %v2453 = vsel %vm971, %v2053, 0
    %v2456 = vsel %vm971, %v2126, 0
    %2458 = vmatprep.subr.mxu0 0.0
    %2459 = vmatpush1.msra.mxu0 %v2288
    %2460 = vmatprep.subr.mxu0 0.0
    %2461 = vmatpush1.msra.mxu0 0.0
    %2462 = vmatprep.subr.mxu0 0.0
    %2463 = vmatpush1.msra.mxu0 0.0
    %2464 = vmatprep.subr.mxu0 0.0
    %2465 = vmatpush1.msra.mxu0 0.0
    %2466 = vmatprep.subr.mxu0 0.0
    %2467 = vmatpush1.msra.mxu0 0.0
    %2468 = vmatprep.subr.mxu0 0.0
    %2469 = vmatpush1.msra.mxu0 0.0
    %2470 = vmatprep.subr.mxu0 0.0
    %2471 = vmatpush1.msra.mxu0 0.0
    %2472 = vmatprep.subr.mxu0 0.0
    %2473 = vmatpush1.msra.mxu0 0.0
    %2474 = vmatprep.subr.mxu0 0.0
    %2475 = vmatpush1.msra.mxu0 0.0
    %2476 = vmatprep.subr.mxu0 0.0
    %2477 = vmatpush1.msra.mxu0 0.0
    %2478 = vmatprep.subr.mxu0 0.0
    %2479 = vmatpush1.msra.mxu0 0.0
    %2480 = vmatprep.subr.mxu0 0.0
    %2481 = vmatpush1.msra.mxu0 0.0
    %2482 = vmatprep.subr.mxu0 0.0
    %2483 = vmatpush1.msra.mxu0 0.0
    %2484 = vmatprep.subr.mxu0 0.0
    %2485 = vmatpush1.msra.mxu0 0.0
    %2486 = vmatprep.subr.mxu0 0.0
    %2487 = vmatpush1.msra.mxu0 0.0
    %2488 = vmatprep.subr.mxu0 0.0
    %2489 = vmatpush1.msra.mxu0 0.0
    %2490 = vmatprep.subr.mxu0 0.0
    %2491 = vmatpush1.msra.mxu0 0.0
    %2492 = vmatprep.subr.mxu0 0.0
    %2493 = vmatpush1.msra.mxu0 0.0
    %2494 = vmatprep.subr.mxu0 0.0
    %2495 = vmatpush1.msra.mxu0 0.0
    %2496 = vmatprep.subr.mxu0 0.0
    %2497 = vmatpush1.msra.mxu0 0.0
    %2498 = vmatprep.subr.mxu0 0.0
    %2499 = vmatpush1.msra.mxu0 0.0
    %2500 = vmatprep.subr.mxu0 0.0
    %2501 = vmatpush1.msra.mxu0 0.0
    %2502 = vmatprep.subr.mxu0 0.0
    %2503 = vmatpush1.msra.mxu0 0.0
    %2504 = vmatprep.subr.mxu0 0.0
    %2505 = vmatpush1.msra.mxu0 0.0
    %2506 = vmatprep.subr.mxu0 0.0
    %2507 = vmatpush1.msra.mxu0 0.0
    %2508 = vmatprep.subr.mxu0 0.0
    %2509 = vmatpush1.msra.mxu0 0.0
    %2510 = vmatprep.subr.mxu0 0.0
    %2511 = vmatpush1.msra.mxu0 0.0
    %2512 = vmatprep.subr.mxu0 0.0
    %2513 = vmatpush1.msra.mxu0 0.0
    %2514 = vmatprep.subr.mxu0 0.0
    %2515 = vmatpush1.msra.mxu0 0.0
    %2516 = vmatprep.subr.mxu0 0.0
    %2517 = vmatpush1.msra.mxu0 0.0
    %2518 = vmatprep.subr.mxu0 0.0
    %2519 = vmatpush1.msra.mxu0 0.0
    %2520 = vmatprep.subr.mxu0 0.0
    %2521 = vmatpush1.msra.mxu0 0.0
    %2522 = vmatprep.mubr.f32.mxu0 0.0
    %2523 = vmatmul.mubr.f32.gmra.mrb[0].mxu0 %v2453
    %v2524 = vpop.f32.mrb[0].mxu0
    %v2525 = vadd.f32 0.0, %v2524
    %v2526 = vpop.f32.mrb[0].mxu0
    %2527 = vmatprep.mubr.f32.mxu0 0.0
    %2528 = vmatmul.mubr.f32.gmra.mrb[0].mxu0 %v2456
    %v2529 = vpop.f32.mrb[0].mxu0
    %v2530 = vadd.f32 0.0, %v2529
    %v2531 = vpop.f32.mrb[0].mxu0
    %2532 = vdwg.mxu0
    %v2534 = vsel %vm971, %v2199, 0
    %v2537 = vsel %vm971, %v2272, 0
    %2539 = vmatprep.subr.mxu0 0.0
    %2540 = vmatpush1.msra.mxu0 %v2289
    %2541 = vmatprep.subr.mxu0 0.0
    %2542 = vmatpush1.msra.mxu0 0.0
    %2543 = vmatprep.subr.mxu0 0.0
    %2544 = vmatpush1.msra.mxu0 0.0
    %2545 = vmatprep.subr.mxu0 0.0
    %2546 = vmatpush1.msra.mxu0 0.0
    %2547 = vmatprep.subr.mxu0 0.0
    %2548 = vmatpush1.msra.mxu0 0.0
    %2549 = vmatprep.subr.mxu0 0.0
    %2550 = vmatpush1.msra.mxu0 0.0
    %2551 = vmatprep.subr.mxu0 0.0
    %2552 = vmatpush1.msra.mxu0 0.0
    %2553 = vmatprep.subr.mxu0 0.0
    %2554 = vmatpush1.msra.mxu0 0.0
    %2555 = vmatprep.subr.mxu0 0.0
    %2556 = vmatpush1.msra.mxu0 0.0
    %2557 = vmatprep.subr.mxu0 0.0
    %2558 = vmatpush1.msra.mxu0 0.0
    %2559 = vmatprep.subr.mxu0 0.0
    %2560 = vmatpush1.msra.mxu0 0.0
    %2561 = vmatprep.subr.mxu0 0.0
    %2562 = vmatpush1.msra.mxu0 0.0
    %2563 = vmatprep.subr.mxu0 0.0
    %2564 = vmatpush1.msra.mxu0 0.0
    %2565 = vmatprep.subr.mxu0 0.0
    %2566 = vmatpush1.msra.mxu0 0.0
    %2567 = vmatprep.subr.mxu0 0.0
    %2568 = vmatpush1.msra.mxu0 0.0
    %2569 = vmatprep.subr.mxu0 0.0
    %2570 = vmatpush1.msra.mxu0 0.0
    %2571 = vmatprep.subr.mxu0 0.0
    %2572 = vmatpush1.msra.mxu0 0.0
    %2573 = vmatprep.subr.mxu0 0.0
    %2574 = vmatpush1.msra.mxu0 0.0
    %2575 = vmatprep.subr.mxu0 0.0
    %2576 = vmatpush1.msra.mxu0 0.0
    %2577 = vmatprep.subr.mxu0 0.0
    %2578 = vmatpush1.msra.mxu0 0.0
    %2579 = vmatprep.subr.mxu0 0.0
    %2580 = vmatpush1.msra.mxu0 0.0
    %2581 = vmatprep.subr.mxu0 0.0
    %2582 = vmatpush1.msra.mxu0 0.0
    %2583 = vmatprep.subr.mxu0 0.0
    %2584 = vmatpush1.msra.mxu0 0.0
    %2585 = vmatprep.subr.mxu0 0.0
    %2586 = vmatpush1.msra.mxu0 0.0
    %2587 = vmatprep.subr.mxu0 0.0
    %2588 = vmatpush1.msra.mxu0 0.0
    %2589 = vmatprep.subr.mxu0 0.0
    %2590 = vmatpush1.msra.mxu0 0.0
    %2591 = vmatprep.subr.mxu0 0.0
    %2592 = vmatpush1.msra.mxu0 0.0
    %2593 = vmatprep.subr.mxu0 0.0
    %2594 = vmatpush1.msra.mxu0 0.0
    %2595 = vmatprep.subr.mxu0 0.0
    %2596 = vmatpush1.msra.mxu0 0.0
    %2597 = vmatprep.subr.mxu0 0.0
    %2598 = vmatpush1.msra.mxu0 0.0
    %2599 = vmatprep.subr.mxu0 0.0
    %2600 = vmatpush1.msra.mxu0 0.0
    %2601 = vmatprep.subr.mxu0 0.0
    %2602 = vmatpush1.msra.mxu0 0.0
    %2603 = vmatprep.mubr.f32.mxu0 0.0
    %2604 = vmatmul.mubr.f32.gmra.mrb[0].mxu0 %v2534
    %v2605 = vpop.f32.mrb[0].mxu0
    %v2606 = vadd.f32 0.0, %v2605
    %v2607 = vpop.f32.mrb[0].mxu0
    %2608 = vmatprep.mubr.f32.mxu0 0.0
    %2609 = vmatmul.mubr.f32.gmra.mrb[0].mxu0 %v2537
    %v2610 = vpop.f32.mrb[0].mxu0
    %v2611 = vadd.f32 0.0, %v2610
    %v2612 = vpop.f32.mrb[0].mxu0
    %2613 = vdwg.mxu0
    %v2614 = vsel %vm30, %v2363, 0.0
    %v2615 = vsel %vm30, %v2444, 0.0
    %v2616 = vadd.f32 %v2614, %v2615
    %v2617 = vsel %vm30, %v2525, 0.0
    %v2618 = vadd.f32 %v2616, %v2617
    %v2619 = vsel %vm30, %v2606, 0.0
    %v2620 = vadd.f32 %v2618, %v2619
    %v2621 = vsel %vm30, %v2368, 0.0
    %v2622 = vsel %vm30, %v2449, 0.0
    %v2623 = vadd.f32 %v2621, %v2622
    %v2624 = vsel %vm30, %v2530, 0.0
    %v2625 = vadd.f32 %v2623, %v2624
    %v2626 = vsel %vm30, %v2611, 0.0
    %v2627 = vadd.f32 %v2625, %v2626
    %2628 = vst.msk [vmem:[#allocation2] sm:$0xff] %vm30, %v2620
    %2629 = vst.msk [vmem:[#allocation2 + $0x8] sm:$0xff] %vm30, %v2627
    // Predicated region
    $region10: #{multi_head_attention.1} parent=1 // pred_check
      _
    $region11: #{multi_head_attention.1} parent=1 // pred_check_branch
      %2631 = sbr.rel (0) target = $region13
    $region12: #{multi_head_attention.1} parent=1 // pred_region
      %s2633 = ssub.s32 256, 256
      %2634 = vsyncadd [#allocation3], %s2633
      %s2635 = sshll.u32 [#allocation2], 4
      %s2636 = int_to_ptr.vmem [resolvable:$true] %s2635
      %2641 = dma.vmem_to_hbm [thread:$0]  %s2636, 256, %s2, [#allocation3], 128, 128, 8
    $region13: #{multi_head_attention.1} parent=1 // pred_fallthru
      _
    // Predicated region
    $region14: #{multi_head_attention.1} parent=1 // pred_check
      _
    $region15: #{multi_head_attention.1} parent=1 // pred_check_branch
      %2643 = sbr.rel (0) target = $region17
    $region16: #{multi_head_attention.1} parent=1 // pred_region
      %2644 = dma.done [#allocation3], 256
    $region17: #{multi_head_attention.1} parent=1 // pred_fallthru
      _
    %2645 = vsyncpa [#allocation3], 1

</llo_original>
